<compile_context>
chip_gen: v5e
topology: v5e:2x2
jax: 0.10.0
libtpu: 0.0.40
codegen_flags: <defaults>
</compile_context>

<pallas_src>
import functools

import jax
import jax.numpy as jnp
from jax import lax
from jax.experimental import pallas as pl
from jax.experimental.pallas import tpu as pltpu


def _linear_attention_kernel(heads, dim_head,
                             x_ref, wqkv_ref, wout_ref, bout_ref,
                             g_ref, be_ref, out_ref):
    """One batch sample per grid step. Layout: channels on sublanes, HW on lanes."""
    hidden = heads * dim_head
    scale = dim_head ** (-0.5)

    x = x_ref[...].astype(jnp.float32)                                  # (C, HW)
    hw = x.shape[1]

    # to_qkv: 1x1 conv, no bias == (3*hidden, C) x (C, HW) matmul (lane-dense output).
    qkv = jnp.dot(wqkv_ref[...], x, preferred_element_type=jnp.float32)  # (3h, HW)

    q = qkv[0 * hidden:1 * hidden].reshape(heads, dim_head, hw)
    k = qkv[1 * hidden:2 * hidden].reshape(heads, dim_head, hw)
    v = qkv[2 * hidden:3 * hidden].reshape(heads, dim_head, hw)

    # q: softmax over dim_head (sublane-group reduction within each head), then scale.
    q = q - jnp.max(q, axis=1, keepdims=True)
    q = jnp.exp(q)
    q = (q / jnp.sum(q, axis=1, keepdims=True)) * scale

    # k: softmax over the spatial axis (lane reduction).
    k = k - jnp.max(k, axis=2, keepdims=True)
    k = jnp.exp(k)
    k = k / jnp.sum(k, axis=2, keepdims=True)

    # context[h, e, d] = sum_n v[h, e, n] * k[h, d, n]   (== einsum 'hdn,hen->hde' transposed)
    context = jnp.einsum("hen,hdn->hed", v, k,
                         preferred_element_type=jnp.float32)            # (heads, e, d)
    # attn[h, e, n] = sum_d context[h, e, d] * q[h, d, n]
    attn = jnp.einsum("hed,hdn->hen", context, q,
                      preferred_element_type=jnp.float32)               # (heads, e, HW)
    attn = attn.reshape(hidden, hw)

    # to_out[0]: 1x1 conv with bias == (C, hidden) x (hidden, HW) + b.
    o = jnp.dot(wout_ref[...], attn,
                preferred_element_type=jnp.float32) + bout_ref[...]     # (C, HW)

    # to_out[1]: GroupNorm(num_groups=1) over all (C, HW), single-pass stats.
    n_el = o.shape[0] * o.shape[1]
    mu = jnp.sum(o) * (1.0 / n_el)
    ex2 = jnp.sum(o * o) * (1.0 / n_el)
    var = ex2 - mu * mu
    o = (o - mu) * lax.rsqrt(var + 1e-5) * g_ref[...] + be_ref[...]

    out_ref[...] = o.astype(out_ref.dtype)


def linear_attention_pallas(x_nchw, params, *, heads=4, dim_head=32):
    N, C, H, W = x_nchw.shape
    HW = H * W
    hidden = heads * dim_head

    # NCHW -> (N, C, H*W): a pure reshape, no transpose / extra HBM traffic.
    x2d = x_nchw.reshape(N, C, HW)

    w_qkv = params["w_qkv"]                      # (3*hidden, C)
    w_out = params["w_out"]                      # (C, hidden)
    b_out = params["b_out"].reshape(C, 1)
    gn_g = params["gn_g"].reshape(C, 1)
    gn_b = params["gn_b"].reshape(C, 1)

    kernel = functools.partial(_linear_attention_kernel, heads, dim_head)

    def full(shape):
        return pl.BlockSpec(shape, lambda b, _n=len(shape): (0,) * _n)

    out2d = pl.pallas_call(
        kernel,
        out_shape=jax.ShapeDtypeStruct((N, C, HW), x_nchw.dtype),
        grid=(N,),
        in_specs=[
            pl.BlockSpec((None, C, HW), lambda b: (b, 0, 0)),   # x (per-sample)
            full((3 * hidden, C)),                              # to_qkv weight
            full((C, hidden)),                                  # to_out conv weight
            full((C, 1)),                                       # to_out conv bias
            full((C, 1)),                                       # GroupNorm gamma
            full((C, 1)),                                       # GroupNorm beta
        ],
        out_specs=pl.BlockSpec((None, C, HW), lambda b: (b, 0, 0)),
        compiler_params=pltpu.CompilerParams(
            dimension_semantics=("parallel",)),                 # batch axis -> v7x 2 TCs
    )(x2d, w_qkv, w_out, b_out, gn_g, gn_b)

    return out2d.reshape(N, C, H, W)


def linear_attention_ref(x, params, *, heads=4, dim_head=32):
    """Pure-JAX reference (same math as the PyTorch module) for validation."""
    N, C, H, W = x.shape
    HW = H * W
    hidden = heads * dim_head
    scale = dim_head ** (-0.5)
    hp = lax.Precision.HIGHEST

    xf = x.reshape(N, C, HW)
    qkv = jnp.einsum("oc,ncs->nos", params["w_qkv"], xf, precision=hp)   # (N, 3h, HW)
    q, k, v = jnp.split(qkv, 3, axis=1)
    q = q.reshape(N, heads, dim_head, HW)
    k = k.reshape(N, heads, dim_head, HW)
    v = v.reshape(N, heads, dim_head, HW)

    q = jax.nn.softmax(q, axis=-2) * scale
    k = jax.nn.softmax(k, axis=-1)

    context = jnp.einsum("nhds,nhes->nhde", k, v, precision=hp)
    out = jnp.einsum("nhde,nhds->nhes", context, q, precision=hp)
    out = out.reshape(N, hidden, HW)

    out = jnp.einsum("oc,ncs->nos", params["w_out"], out, precision=hp)
    out = out + params["b_out"].reshape(1, C, 1)

    mu = jnp.mean(out, axis=(1, 2), keepdims=True)
    var = jnp.mean((out - mu) ** 2, axis=(1, 2), keepdims=True)
    out = ((out - mu) / jnp.sqrt(var + 1e-5)
           * params["gn_g"].reshape(1, C, 1) + params["gn_b"].reshape(1, C, 1))
    return out.reshape(N, C, H, W)


if __name__ == "__main__":
    key = jax.random.PRNGKey(0)
    N, C, H, W = 2, 4, 16, 16
    heads, dim_head = 4, 32
    hidden = heads * dim_head
    f32 = jnp.float32
    ks = jax.random.split(key, 6)

    # Deterministic synthetic parameters (shapes follow LinearAttention.__init__).
    params = {
        "w_qkv": 0.2 * jax.random.normal(ks[0], (3 * hidden, C), f32),   # Conv2d 1x1, no bias
        "w_out": 0.2 * jax.random.normal(ks[1], (C, hidden), f32),       # Conv2d 1x1
        "b_out": 0.1 * jax.random.normal(ks[2], (C,), f32),
        "gn_g":  1.0 + 0.1 * jax.random.normal(ks[3], (C,), f32),        # GroupNorm(1, C)
        "gn_b":  0.1 * jax.random.normal(ks[4], (C,), f32),
    }
    x = jax.random.normal(ks[5], (N, C, H, W), f32)

    out = linear_attention_pallas(x, params, heads=heads, dim_head=dim_head)
    out = jax.block_until_ready(out)

    ref = linear_attention_ref(x, params, heads=heads, dim_head=dim_head)
    assert out.shape == (N, C, H, W), out.shape
    max_err = float(jnp.max(jnp.abs(out - ref)))
    tol = 2e-2 * float(jnp.max(jnp.abs(ref))) + 1e-3
    if not (max_err < tol):
        raise AssertionError(f"mismatch: max_err={max_err} tol={tol}")
    print("KERNEL_OK")
</pallas_src>

<mosaic_0001>
module attributes {stable_mosaic.version = 11 : i64} {
  func.func @_linear_attention_kernel(%arg0: i32, %arg1: memref<1x4x256xf32, #tpu.memory_space<vmem>>, %arg2: memref<384x4xf32, #tpu.memory_space<vmem>>, %arg3: memref<4x128xf32, #tpu.memory_space<vmem>>, %arg4: memref<4x1xf32, #tpu.memory_space<vmem>>, %arg5: memref<4x1xf32, #tpu.memory_space<vmem>>, %arg6: memref<4x1xf32, #tpu.memory_space<vmem>>, %arg7: memref<1x4x256xf32, #tpu.memory_space<vmem>>) attributes {dimension_semantics = [#tpu.dimension_semantics<parallel>], iteration_bounds = array<i64: 2>, scalar_prefetch = 0 : i64, scratch_operands = 0 : i64, tpu.core_type = #tpu.core_type<tc>, window_params = [{transform_indices = @transform_0, window_bounds = array<i64: 1, 4, 256>}, {pipeline_mode = #tpu.pipeline_mode<synchronous>, transform_indices = @transform_1, window_bounds = array<i64: 384, 4>}, {pipeline_mode = #tpu.pipeline_mode<synchronous>, transform_indices = @transform_2, window_bounds = array<i64: 4, 128>}, {pipeline_mode = #tpu.pipeline_mode<synchronous>, transform_indices = @transform_3, window_bounds = array<i64: 4, 1>}, {pipeline_mode = #tpu.pipeline_mode<synchronous>, transform_indices = @transform_4, window_bounds = array<i64: 4, 1>}, {pipeline_mode = #tpu.pipeline_mode<synchronous>, transform_indices = @transform_5, window_bounds = array<i64: 4, 1>}, {transform_indices = @transform_6, window_bounds = array<i64: 1, 4, 256>}]} {
    %c0 = arith.constant 0 : index
    %c0_0 = arith.constant 0 : index
    %c0_1 = arith.constant 0 : index
    %0 = vector.load %arg1[%c0, %c0_0, %c0_1] : memref<1x4x256xf32, #tpu.memory_space<vmem>>, vector<1x4x256xf32>
    %1 = vector.shape_cast %0 : vector<1x4x256xf32> to vector<4x256xf32>
    %c0_2 = arith.constant 0 : index
    %c0_3 = arith.constant 0 : index
    %2 = vector.load %arg2[%c0_2, %c0_3] : memref<384x4xf32, #tpu.memory_space<vmem>>, vector<384x4xf32>
    %cst = arith.constant dense<0.000000e+00> : vector<384x256xf32>
    %3 = tpu.matmul %2, %1, %cst {dimension_numbers = #tpu.dot_dimension_numbers<[1], [0], [0], [1], [0, 0, 1, 1], [], []>} : vector<384x4xf32>, vector<4x256xf32>, vector<384x256xf32> -> vector<384x256xf32>
    %4 = vector.extract_strided_slice %3 {offsets = [0, 0], sizes = [128, 256], strides = [1, 1]} : vector<384x256xf32> to vector<128x256xf32>
    %5 = vector.shape_cast %4 : vector<128x256xf32> to vector<4x32x256xf32>
    %6 = vector.extract_strided_slice %3 {offsets = [128, 0], sizes = [128, 256], strides = [1, 1]} : vector<384x256xf32> to vector<128x256xf32>
    %7 = vector.shape_cast %6 : vector<128x256xf32> to vector<4x32x256xf32>
    %8 = vector.extract_strided_slice %3 {offsets = [256, 0], sizes = [128, 256], strides = [1, 1]} : vector<384x256xf32> to vector<128x256xf32>
    %9 = vector.shape_cast %8 : vector<128x256xf32> to vector<4x32x256xf32>
    %cst_4 = arith.constant dense<0xFF800000> : vector<4x256xf32>
    %10 = vector.multi_reduction <maximumf>, %5, %cst_4 [1] : vector<4x32x256xf32> to vector<4x256xf32>
    %11 = vector.shape_cast %10 : vector<4x256xf32> to vector<4x1x256xf32>
    %12 = vector.broadcast %11 : vector<4x1x256xf32> to vector<4x32x256xf32>
    %13 = arith.subf %5, %12 : vector<4x32x256xf32>
    %14 = math.exp %13 : vector<4x32x256xf32>
    %cst_5 = arith.constant dense<0.000000e+00> : vector<4x256xf32>
    %15 = vector.multi_reduction <add>, %14, %cst_5 [1] : vector<4x32x256xf32> to vector<4x256xf32>
    %16 = vector.shape_cast %15 : vector<4x256xf32> to vector<4x1x256xf32>
    %17 = vector.broadcast %16 : vector<4x1x256xf32> to vector<4x32x256xf32>
    %18 = arith.divf %14, %17 : vector<4x32x256xf32>
    %cst_6 = arith.constant 0.176776692 : f32
    %19 = vector.broadcast %cst_6 : f32 to vector<4x32x256xf32>
    %20 = arith.mulf %18, %19 : vector<4x32x256xf32>
    %cst_7 = arith.constant dense<0xFF800000> : vector<4x32xf32>
    %21 = vector.multi_reduction <maximumf>, %7, %cst_7 [2] : vector<4x32x256xf32> to vector<4x32xf32>
    %22 = vector.shape_cast %21 : vector<4x32xf32> to vector<4x32x1xf32>
    %23 = vector.broadcast %22 : vector<4x32x1xf32> to vector<4x32x256xf32>
    %24 = arith.subf %7, %23 : vector<4x32x256xf32>
    %25 = math.exp %24 : vector<4x32x256xf32>
    %cst_8 = arith.constant dense<0.000000e+00> : vector<4x32xf32>
    %26 = vector.multi_reduction <add>, %25, %cst_8 [2] : vector<4x32x256xf32> to vector<4x32xf32>
    %27 = vector.shape_cast %26 : vector<4x32xf32> to vector<4x32x1xf32>
    %28 = vector.broadcast %27 : vector<4x32x1xf32> to vector<4x32x256xf32>
    %29 = arith.divf %25, %28 : vector<4x32x256xf32>
    "tpu.trace_start"() <{level = 10 : i32, message = "hen,hdn->hed"}> : () -> ()
    %cst_9 = arith.constant dense<0.000000e+00> : vector<4x32x32xf32>
    %30 = tpu.matmul %9, %29, %cst_9 {dimension_numbers = #tpu.dot_dimension_numbers<[2], [2], [1], [1], [0, 0, 0, 1, 1, 1], [0], [0]>} : vector<4x32x256xf32>, vector<4x32x256xf32>, vector<4x32x32xf32> -> vector<4x32x32xf32>
    "tpu.trace_stop"() : () -> ()
    "tpu.trace_start"() <{level = 10 : i32, message = "hed,hdn->hen"}> : () -> ()
    %cst_10 = arith.constant dense<0.000000e+00> : vector<4x32x256xf32>
    %31 = tpu.matmul %30, %20, %cst_10 {dimension_numbers = #tpu.dot_dimension_numbers<[2], [1], [1], [2], [0, 0, 0, 1, 1, 2], [0], [0]>} : vector<4x32x32xf32>, vector<4x32x256xf32>, vector<4x32x256xf32> -> vector<4x32x256xf32>
    "tpu.trace_stop"() : () -> ()
    %32 = vector.shape_cast %31 : vector<4x32x256xf32> to vector<128x256xf32>
    %c0_11 = arith.constant 0 : index
    %c0_12 = arith.constant 0 : index
    %33 = vector.load %arg3[%c0_11, %c0_12] : memref<4x128xf32, #tpu.memory_space<vmem>>, vector<4x128xf32>
    %cst_13 = arith.constant dense<0.000000e+00> : vector<4x256xf32>
    %34 = tpu.matmul %33, %32, %cst_13 {dimension_numbers = #tpu.dot_dimension_numbers<[1], [0], [0], [1], [0, 0, 1, 1], [], []>} : vector<4x128xf32>, vector<128x256xf32>, vector<4x256xf32> -> vector<4x256xf32>
    %c0_14 = arith.constant 0 : index
    %c0_15 = arith.constant 0 : index
    %35 = vector.load %arg4[%c0_14, %c0_15] : memref<4x1xf32, #tpu.memory_space<vmem>>, vector<4x1xf32>
    %36 = vector.broadcast %35 : vector<4x1xf32> to vector<4x256xf32>
    %37 = arith.addf %34, %36 : vector<4x256xf32>
    %38 = vector.shape_cast %37 : vector<4x256xf32> to vector<1x4x256xf32>
    %cst_16 = arith.constant dense<0.000000e+00> : vector<1xf32>
    %39 = vector.multi_reduction <add>, %38, %cst_16 [1, 2] : vector<1x4x256xf32> to vector<1xf32>
    %40 = vector.shape_cast %39 : vector<1xf32> to vector<1x1x1xf32>
    %41 = vector.extract %40[0, 0, 0] : f32 from vector<1x1x1xf32>
    %cst_17 = arith.constant 9.765625E-4 : f32
    %42 = arith.mulf %41, %cst_17 : f32
    %43 = arith.mulf %37, %37 : vector<4x256xf32>
    %44 = vector.shape_cast %43 : vector<4x256xf32> to vector<1x4x256xf32>
    %cst_18 = arith.constant dense<0.000000e+00> : vector<1xf32>
    %45 = vector.multi_reduction <add>, %44, %cst_18 [1, 2] : vector<1x4x256xf32> to vector<1xf32>
    %46 = vector.shape_cast %45 : vector<1xf32> to vector<1x1x1xf32>
    %47 = vector.extract %46[0, 0, 0] : f32 from vector<1x1x1xf32>
    %cst_19 = arith.constant 9.765625E-4 : f32
    %48 = arith.mulf %47, %cst_19 : f32
    %49 = arith.mulf %42, %42 : f32
    %50 = arith.subf %48, %49 : f32
    %51 = vector.broadcast %42 : f32 to vector<4x256xf32>
    %52 = arith.subf %37, %51 : vector<4x256xf32>
    %cst_20 = arith.constant 9.99999974E-6 : f32
    %53 = arith.addf %50, %cst_20 : f32
    %54 = math.rsqrt %53 : f32
    %55 = vector.broadcast %54 : f32 to vector<4x256xf32>
    %56 = arith.mulf %52, %55 : vector<4x256xf32>
    %c0_21 = arith.constant 0 : index
    %c0_22 = arith.constant 0 : index
    %57 = vector.load %arg5[%c0_21, %c0_22] : memref<4x1xf32, #tpu.memory_space<vmem>>, vector<4x1xf32>
    %58 = vector.broadcast %57 : vector<4x1xf32> to vector<4x256xf32>
    %59 = arith.mulf %56, %58 : vector<4x256xf32>
    %c0_23 = arith.constant 0 : index
    %c0_24 = arith.constant 0 : index
    %60 = vector.load %arg6[%c0_23, %c0_24] : memref<4x1xf32, #tpu.memory_space<vmem>>, vector<4x1xf32>
    %61 = vector.broadcast %60 : vector<4x1xf32> to vector<4x256xf32>
    %62 = arith.addf %59, %61 : vector<4x256xf32>
    %c0_25 = arith.constant 0 : index
    %c0_26 = arith.constant 0 : index
    %c0_27 = arith.constant 0 : index
    %63 = vector.load %arg7[%c0_25, %c0_26, %c0_27] : memref<1x4x256xf32, #tpu.memory_space<vmem>>, vector<1x4x256xf32>
    %64 = vector.shape_cast %63 : vector<1x4x256xf32> to vector<4x256xf32>
    %65 = vector.shape_cast %62 : vector<4x256xf32> to vector<1x4x256xf32>
    tpu.vector_store %arg7[%c0_25, %c0_26, %c0_27], %65 {strides = array<i32>} : memref<1x4x256xf32, #tpu.memory_space<vmem>>, vector<1x4x256xf32>,
    return
  }
  func.func @transform_0(%arg0: i32) -> (i32, i32, i32) {
    %c0_i32 = arith.constant 0 : i32
    %c0_i32_0 = arith.constant 0 : i32
    %c0_i32_1 = arith.constant 0 : i32
    return %arg0, %c0_i32, %c0_i32_0 : i32, i32, i32
  }
  func.func @transform_1(%arg0: i32) -> (i32, i32) {
    %c0_i32 = arith.constant 0 : i32
    %c0_i32_0 = arith.constant 0 : i32
    %c0_i32_1 = arith.constant 0 : i32
    return %c0_i32, %c0_i32_0 : i32, i32
  }
  func.func @transform_2(%arg0: i32) -> (i32, i32) {
    %c0_i32 = arith.constant 0 : i32
    %c0_i32_0 = arith.constant 0 : i32
    %c0_i32_1 = arith.constant 0 : i32
    return %c0_i32, %c0_i32_0 : i32, i32
  }
  func.func @transform_3(%arg0: i32) -> (i32, i32) {
    %c0_i32 = arith.constant 0 : i32
    %c0_i32_0 = arith.constant 0 : i32
    %c0_i32_1 = arith.constant 0 : i32
    return %c0_i32, %c0_i32_0 : i32, i32
  }
  func.func @transform_4(%arg0: i32) -> (i32, i32) {
    %c0_i32 = arith.constant 0 : i32
    %c0_i32_0 = arith.constant 0 : i32
    %c0_i32_1 = arith.constant 0 : i32
    return %c0_i32, %c0_i32_0 : i32, i32
  }
  func.func @transform_5(%arg0: i32) -> (i32, i32) {
    %c0_i32 = arith.constant 0 : i32
    %c0_i32_0 = arith.constant 0 : i32
    %c0_i32_1 = arith.constant 0 : i32
    return %c0_i32, %c0_i32_0 : i32, i32
  }
  func.func @transform_6(%arg0: i32) -> (i32, i32, i32) {
    %c0_i32 = arith.constant 0 : i32
    %c0_i32_0 = arith.constant 0 : i32
    %c0_i32_1 = arith.constant 0 : i32
    return %arg0, %c0_i32, %c0_i32_0 : i32, i32, i32
  }
}

</mosaic_0001>

<llo_original>
// kernel: tpu_custom_call.1
$region0: #{tpu_custom_call.1}
  #allocation0 [shape = 'u32[]', space=smem, size = 0x4, offset = 0x4, fixed_abs, tag = 'smem constant byte address 0x4 - core index']
  #allocation1 [shape = 'u32[72,128]{1,0:T(1,128)}', space=vmem, size = 0x9000, scoped, tag = 'internal scratch']
  %s0 = inlined_call_operand.vmem [shape: f32[2,4,256], index: 0, kind: input, shape index: {}]
  %s1 = inlined_call_operand.vmem [shape: f32[384,4], index: 1, kind: input, shape index: {}]
  %s2 = inlined_call_operand.vmem [shape: f32[4,128], index: 2, kind: input, shape index: {}]
  %s3 = inlined_call_operand.vmem [shape: f32[4,1], index: 3, kind: input, shape index: {}]
  %s4 = inlined_call_operand.vmem [shape: f32[4,1], index: 4, kind: input, shape index: {}]
  %s5 = inlined_call_operand.vmem [shape: f32[4,1], index: 5, kind: input, shape index: {}]
  %s6 = inlined_call_operand.hbm [shape: f32[2,4,256], index: 6, kind: output, shape index: {}]
  %s7 = sld [smem:[#allocation0]]
  $region57: #{tpu_custom_call.1} parent=0
    _
  %s9 = ssub.s32 1, %s7
  %s10 = scalar_select 0, %s9, %s7
  $region1: #{tpu_custom_call.1} parent=0
    #allocation2 [shape = 'u8[8192]{0}', space=vmem, size = 0x2000, scoped, tag = 'output window, operand 0']
    #allocation3 [shape = 's32[2]{0}', space=sflag, size = 0x8, scoped, tag = 'scoped memory for tpu_custom_call.1']
    %11 = vsyncpa [#allocation3], 0
    %s12 = scalar_lea.sflag [#allocation3], 1
    %13 = vsyncpa %s12, 0
    loop: start=0, step=1, limit=4
    $region2: #{tpu_custom_call.1} parent=1 // loop_pre_header
      _
    $region3: #{tpu_custom_call.1} parent=1 // loop_header
      %s15 = sphi 0, %s19
      %p16 = scmp.ge.s32.totalorder %s15, 4
      %s25 = sphi 0, %s27
      %s28 = sphi 0, %s25
      %s29 = sphi 0, %s28
      %s45 = sphi 0, %s29
      %s49 = sphi 0, %s49
      %s51 = sphi 0, %s49
      %s52 = sphi 0, %s51
      %s66 = sphi 0, %s52
      %s70 = sphi 0, %s70
      %s72 = sphi 0, %s70
      %s73 = sphi 0, %s72
      %s87 = sphi 0, %s73
      %s91 = sphi 0, %s91
      %s93 = sphi 0, %s91
      %s94 = sphi 0, %s93
      %s108 = sphi 0, %s94
      %s112 = sphi 0, %s112
      %s114 = sphi 0, %s112
      %s115 = sphi 0, %s114
      %s129 = sphi 0, %s115
      %s133 = sphi 0, %s133
      %s135 = sphi 0, %s133
      %s136 = sphi 0, %s135
      %s150 = sphi 0, %s136
      %s156 = sphi 0, %s158
      %s159 = sphi 0, %s156
      %s160 = sphi 0, %s159
      %s176 = sphi 0, %s160
    $region4: #{tpu_custom_call.1} parent=1 // loop_header_branch
      %18 = sbr.rel (%p16) target = $region8
    $region5: #{tpu_custom_call.1} parent=1 // loop_body
      %s20 = ssub.s32 %s15, 1
      %s21 = ssub.s32 %s15, 2
      %s22 = sadd.s32 %s15, 1
      %s23 = ssub.s32 %s15, %s22
      %p24 = scmp.eq.s32.totalorder %s23, 0
      %s26 = sadd.s32 %s25, 1
      %s27 = scalar_select %p24, %s25, %s26
      %p30 = pneg %p24
      %p31 = scmp.eq.s32.totalorder %s15, 1
      %p32 = por %p30, %p31
      %p33 = scmp.ne.s32.totalorder %s25, %s28
      %p34 = scmp.eq.s32.totalorder %s15, 0
      %p35 = por %p33, %p34
      %p36 = scmp.ne.s32.totalorder %s25, %s28
      %p37 = scmp.eq.s32.totalorder %s20, 1
      %p38 = por %p36, %p37
      %p39 = scmp.ne.s32.totalorder %s28, %s29
      %p40 = scmp.eq.s32.totalorder %s20, 0
      %p41 = por %p39, %p40
      %p42 = scmp.ne.s32.totalorder %s28, %s29
      %p43 = scmp.eq.s32.totalorder %s21, 1
      %p44 = por %p42, %p43
      %p46 = scmp.ne.s32.totalorder %s29, %s45
      %p47 = scmp.eq.s32.totalorder %s21, 0
      %p48 = por %p46, %p47
      %s50 = sadd.s32 %s49, 1
      %p53 = scmp.eq.s32.totalorder %s15, 1
      %p54 = scmp.ne.s32.totalorder %s49, %s51
      %p55 = scmp.eq.s32.totalorder %s15, 0
      %p56 = por %p54, %p55
      %p57 = scmp.ne.s32.totalorder %s49, %s51
      %p58 = scmp.eq.s32.totalorder %s20, 1
      %p59 = por %p57, %p58
      %p60 = scmp.ne.s32.totalorder %s51, %s52
      %p61 = scmp.eq.s32.totalorder %s20, 0
      %p62 = por %p60, %p61
      %p63 = scmp.ne.s32.totalorder %s51, %s52
      %p64 = scmp.eq.s32.totalorder %s21, 1
      %p65 = por %p63, %p64
      %p67 = scmp.ne.s32.totalorder %s52, %s66
      %p68 = scmp.eq.s32.totalorder %s21, 0
      %p69 = por %p67, %p68
      %s71 = sadd.s32 %s70, 1
      %p74 = scmp.eq.s32.totalorder %s15, 1
      %p75 = scmp.ne.s32.totalorder %s70, %s72
      %p76 = scmp.eq.s32.totalorder %s15, 0
      %p77 = por %p75, %p76
      %p78 = scmp.ne.s32.totalorder %s70, %s72
      %p79 = scmp.eq.s32.totalorder %s20, 1
      %p80 = por %p78, %p79
      %p81 = scmp.ne.s32.totalorder %s72, %s73
      %p82 = scmp.eq.s32.totalorder %s20, 0
      %p83 = por %p81, %p82
      %p84 = scmp.ne.s32.totalorder %s72, %s73
      %p85 = scmp.eq.s32.totalorder %s21, 1
      %p86 = por %p84, %p85
      %p88 = scmp.ne.s32.totalorder %s73, %s87
      %p89 = scmp.eq.s32.totalorder %s21, 0
      %p90 = por %p88, %p89
      %s92 = sadd.s32 %s91, 1
      %p95 = scmp.eq.s32.totalorder %s15, 1
      %p96 = scmp.ne.s32.totalorder %s91, %s93
      %p97 = scmp.eq.s32.totalorder %s15, 0
      %p98 = por %p96, %p97
      %p99 = scmp.ne.s32.totalorder %s91, %s93
      %p100 = scmp.eq.s32.totalorder %s20, 1
      %p101 = por %p99, %p100
      %p102 = scmp.ne.s32.totalorder %s93, %s94
      %p103 = scmp.eq.s32.totalorder %s20, 0
      %p104 = por %p102, %p103
      %p105 = scmp.ne.s32.totalorder %s93, %s94
      %p106 = scmp.eq.s32.totalorder %s21, 1
      %p107 = por %p105, %p106
      %p109 = scmp.ne.s32.totalorder %s94, %s108
      %p110 = scmp.eq.s32.totalorder %s21, 0
      %p111 = por %p109, %p110
      %s113 = sadd.s32 %s112, 1
      %p116 = scmp.eq.s32.totalorder %s15, 1
      %p117 = scmp.ne.s32.totalorder %s112, %s114
      %p118 = scmp.eq.s32.totalorder %s15, 0
      %p119 = por %p117, %p118
      %p120 = scmp.ne.s32.totalorder %s112, %s114
      %p121 = scmp.eq.s32.totalorder %s20, 1
      %p122 = por %p120, %p121
      %p123 = scmp.ne.s32.totalorder %s114, %s115
      %p124 = scmp.eq.s32.totalorder %s20, 0
      %p125 = por %p123, %p124
      %p126 = scmp.ne.s32.totalorder %s114, %s115
      %p127 = scmp.eq.s32.totalorder %s21, 1
      %p128 = por %p126, %p127
      %p130 = scmp.ne.s32.totalorder %s115, %s129
      %p131 = scmp.eq.s32.totalorder %s21, 0
      %p132 = por %p130, %p131
      %s134 = sadd.s32 %s133, 1
      %p137 = scmp.eq.s32.totalorder %s15, 1
      %p138 = scmp.ne.s32.totalorder %s133, %s135
      %p139 = scmp.eq.s32.totalorder %s15, 0
      %p140 = por %p138, %p139
      %p141 = scmp.ne.s32.totalorder %s133, %s135
      %p142 = scmp.eq.s32.totalorder %s20, 1
      %p143 = por %p141, %p142
      %p144 = scmp.ne.s32.totalorder %s135, %s136
      %p145 = scmp.eq.s32.totalorder %s20, 0
      %p146 = por %p144, %p145
      %p147 = scmp.ne.s32.totalorder %s135, %s136
      %p148 = scmp.eq.s32.totalorder %s21, 1
      %p149 = por %p147, %p148
      %p151 = scmp.ne.s32.totalorder %s136, %s150
      %p152 = scmp.eq.s32.totalorder %s21, 0
      %p153 = por %p151, %p152
      %s154 = ssub.s32 %s15, %s22
      %p155 = scmp.eq.s32.totalorder %s154, 0
      %s157 = sadd.s32 %s156, 1
      %s158 = scalar_select %p155, %s156, %s157
      %p161 = pneg %p155
      %p162 = scmp.eq.s32.totalorder %s15, 1
      %p163 = por %p161, %p162
      %p164 = scmp.ne.s32.totalorder %s156, %s159
      %p165 = scmp.eq.s32.totalorder %s15, 0
      %p166 = por %p164, %p165
      %p167 = scmp.ne.s32.totalorder %s156, %s159
      %p168 = scmp.eq.s32.totalorder %s20, 1
      %p169 = por %p167, %p168
      %p170 = scmp.ne.s32.totalorder %s159, %s160
      %p171 = scmp.eq.s32.totalorder %s20, 0
      %p172 = por %p170, %p171
      %p173 = scmp.ne.s32.totalorder %s159, %s160
      %p174 = scmp.eq.s32.totalorder %s21, 1
      %p175 = por %p173, %p174
      %p177 = scmp.ne.s32.totalorder %s160, %s176
      %p178 = scmp.eq.s32.totalorder %s21, 0
      %p179 = por %p177, %p178
      %p180 = scmp.le.s32.totalorder 1, %s15
      %p181 = scmp.lt.s32.totalorder %s15, 3
      %p182 = pnand %p180, %p181
      %p183 = pneg %p182
      // Predicated region
      $region9: #{tpu_custom_call.1} parent=5 // pred_check
        _
      $region10: #{tpu_custom_call.1} parent=5 // pred_check_branch
        %185 = sbr.rel (%p182) target = $region12
      $region11: #{tpu_custom_call.1} parent=5 // pred_region
        %s186 = ssub.s32 %s15, 1
        // Predicated region
        $region13: #{tpu_custom_call.1} parent=11 // pred_check
          %p187 = pneg %p62
        $region14: #{tpu_custom_call.1} parent=11 // pred_check_branch
          %189 = sbr.rel (%p187) target = $region16
        $region15: #{tpu_custom_call.1} parent=11 // pred_region
          _
        $region16: #{tpu_custom_call.1} parent=11 // pred_fallthru
          _
        // Predicated region
        $region17: #{tpu_custom_call.1} parent=11 // pred_check
          %p190 = pneg %p83
        $region18: #{tpu_custom_call.1} parent=11 // pred_check_branch
          %192 = sbr.rel (%p190) target = $region20
        $region19: #{tpu_custom_call.1} parent=11 // pred_region
          _
        $region20: #{tpu_custom_call.1} parent=11 // pred_fallthru
          _
        // Predicated region
        $region21: #{tpu_custom_call.1} parent=11 // pred_check
          %p193 = pneg %p104
        $region22: #{tpu_custom_call.1} parent=11 // pred_check_branch
          %195 = sbr.rel (%p193) target = $region24
        $region23: #{tpu_custom_call.1} parent=11 // pred_region
          _
        $region24: #{tpu_custom_call.1} parent=11 // pred_fallthru
          _
        // Predicated region
        $region25: #{tpu_custom_call.1} parent=11 // pred_check
          %p196 = pneg %p125
        $region26: #{tpu_custom_call.1} parent=11 // pred_check_branch
          %198 = sbr.rel (%p196) target = $region28
        $region27: #{tpu_custom_call.1} parent=11 // pred_region
          _
        $region28: #{tpu_custom_call.1} parent=11 // pred_fallthru
          _
        // Predicated region
        $region29: #{tpu_custom_call.1} parent=11 // pred_check
          %p199 = pneg %p146
        $region30: #{tpu_custom_call.1} parent=11 // pred_check_branch
          %201 = sbr.rel (%p199) target = $region32
        $region31: #{tpu_custom_call.1} parent=11 // pred_region
          _
        $region32: #{tpu_custom_call.1} parent=11 // pred_fallthru
          _
      $region12: #{tpu_custom_call.1} parent=5 // pred_fallthru
        _
      %p202 = scmp.lt.s32.totalorder %s15, 2
      // Predicated region
      $region33: #{tpu_custom_call.1} parent=5 // pred_check
        %p203 = pneg %p202
      $region34: #{tpu_custom_call.1} parent=5 // pred_check_branch
        %205 = sbr.rel (%p203) target = $region36
      $region35: #{tpu_custom_call.1} parent=5 // pred_region
        // Predicated region
        $region37: #{tpu_custom_call.1} parent=35 // pred_check
          %p206 = pneg %p35
        $region38: #{tpu_custom_call.1} parent=35 // pred_check_branch
          %208 = sbr.rel (%p206) target = $region40
        $region39: #{tpu_custom_call.1} parent=35 // pred_region
          %p209 = scmp.lt.s32.totalorder %s15, 1
          %s210 = scalar_select %p209, %s15, 1
          %s211 = smul.addr %s210, 2
          %s212 = smul.addr %s211, 4
          %s213 = scalar_lea.vmem %s0, %s212
        $region40: #{tpu_custom_call.1} parent=35 // pred_fallthru
          _
      $region36: #{tpu_custom_call.1} parent=5 // pred_fallthru
        _
      %p214 = scmp.le.s32.totalorder 1, %s15
      %p215 = scmp.lt.s32.totalorder %s15, 3
      %p216 = pnand %p214, %p215
      %p217 = pneg %p216
      // Predicated region
      $region41: #{tpu_custom_call.1} parent=5 // pred_check
        _
      $region42: #{tpu_custom_call.1} parent=5 // pred_check_branch
        %219 = sbr.rel (%p216) target = $region44
      $region43: #{tpu_custom_call.1} parent=5 // pred_region
        %s220 = ssub.s32 %s15, 1
        %p221 = scmp.lt.s32.totalorder %s20, 1
        %s222 = scalar_select %p221, %s20, 1
        %s223 = smul.addr %s222, 2
        %s224 = smul.addr %s223, 4
        %s225 = scalar_lea.vmem %s0, %s224
        %p226 = pneg %p41
        %p227 = pneg %p38
        %p228 = pneg %p62
        %p229 = pneg %p59
        %p230 = pneg %p83
        %p231 = pneg %p80
        %p232 = pneg %p104
        %p233 = pneg %p101
        %p234 = pneg %p125
        %p235 = pneg %p122
        %p236 = pneg %p146
        %p237 = pneg %p143
        %p238 = pneg %p172
        %p239 = pneg %p169
        %s240 = sand.u32 %s159, 1
        %s241 = scalar_lea.sflag [#allocation3], %s240
        %s242 = sand.u32 %s159, 1
        %s243 = smul.addr %s242, 8
        %s244 = scalar_lea.vmem [#allocation2], %s243
        %p245 = scmp.lt.s32.totalorder %s20, 1
        %s246 = scalar_select %p245, %s20, 1
        %s247 = smul.addr %s246, 2
        %s248 = smul.addr %s247, 4
        %s249 = scalar_lea.vmem %s0, %s248
        %v250 = vld [vmem:[%s249] sm:$0xff]
        %v251 = vld [vmem:[%s1] sm:$0xff]
        %v252 = vld [vmem:[%s1 + $0x8] sm:$0xff]
        %v253 = vld [vmem:[%s1 + $0x10] sm:$0xff]
        %v254 = vld [vmem:[%s1 + $0x18] sm:$0xff]
        %v255 = vld [vmem:[%s1 + $0x20] sm:$0xff]
        %v256 = vld [vmem:[%s1 + $0x28] sm:$0xff]
        %v257 = vld [vmem:[%s1 + $0x30] sm:$0xff]
        %v258 = vld [vmem:[%s1 + $0x38] sm:$0xff]
        %v259 = vld [vmem:[%s1 + $0x40] sm:$0xff]
        %v260 = vld [vmem:[%s1 + $0x48] sm:$0xff]
        %v261 = vld [vmem:[%s1 + $0x50] sm:$0xff]
        %v262 = vld [vmem:[%s1 + $0x58] sm:$0xff]
        %v263 = vld [vmem:[%s1 + $0x60] sm:$0xff]
        %v264 = vld [vmem:[%s1 + $0x68] sm:$0xff]
        %v265 = vld [vmem:[%s1 + $0x70] sm:$0xff]
        %v266 = vld [vmem:[%s1 + $0x78] sm:$0xff]
        %v267 = vld [vmem:[%s1 + $0x80] sm:$0xff]
        %v268 = vld [vmem:[%s1 + $0x88] sm:$0xff]
        %v269 = vld [vmem:[%s1 + $0x90] sm:$0xff]
        %v270 = vld [vmem:[%s1 + $0x98] sm:$0xff]
        %v271 = vld [vmem:[%s1 + $0xa0] sm:$0xff]
        %v272 = vld [vmem:[%s1 + $0xa8] sm:$0xff]
        %v273 = vld [vmem:[%s1 + $0xb0] sm:$0xff]
        %v274 = vld [vmem:[%s1 + $0xb8] sm:$0xff]
        %v275 = vld [vmem:[%s1 + $0xc0] sm:$0xff]
        %v276 = vld [vmem:[%s1 + $0xc8] sm:$0xff]
        %v277 = vld [vmem:[%s1 + $0xd0] sm:$0xff]
        %v278 = vld [vmem:[%s1 + $0xd8] sm:$0xff]
        %v279 = vld [vmem:[%s1 + $0xe0] sm:$0xff]
        %v280 = vld [vmem:[%s1 + $0xe8] sm:$0xff]
        %v281 = vld [vmem:[%s1 + $0xf0] sm:$0xff]
        %v282 = vld [vmem:[%s1 + $0xf8] sm:$0xff]
        %v283 = vld [vmem:[%s1 + $0x100] sm:$0xff]
        %v284 = vld [vmem:[%s1 + $0x108] sm:$0xff]
        %v285 = vld [vmem:[%s1 + $0x110] sm:$0xff]
        %v286 = vld [vmem:[%s1 + $0x118] sm:$0xff]
        %v287 = vld [vmem:[%s1 + $0x120] sm:$0xff]
        %v288 = vld [vmem:[%s1 + $0x128] sm:$0xff]
        %v289 = vld [vmem:[%s1 + $0x130] sm:$0xff]
        %v290 = vld [vmem:[%s1 + $0x138] sm:$0xff]
        %v291 = vld [vmem:[%s1 + $0x140] sm:$0xff]
        %v292 = vld [vmem:[%s1 + $0x148] sm:$0xff]
        %v293 = vld [vmem:[%s1 + $0x150] sm:$0xff]
        %v294 = vld [vmem:[%s1 + $0x158] sm:$0xff]
        %v295 = vld [vmem:[%s1 + $0x160] sm:$0xff]
        %v296 = vld [vmem:[%s1 + $0x168] sm:$0xff]
        %v297 = vld [vmem:[%s1 + $0x170] sm:$0xff]
        %v298 = vld [vmem:[%s1 + $0x178] sm:$0xff]
        %300 = vst [vmem:[#allocation1] ss:$2 sm:$0xff] %v250
        %v301 = vld.sshfl [vmem:[#allocation1] sm:$0xff pattern:$0x75316420]
        %v302 = vld.sshfl [vmem:[#allocation1 + $0x8] sm:$0xff pattern:$0x75316420]
        %vm303 = vcmask 31744
        %v305 = vsel %vm303, %v251, 0
        %v308 = vsel %vm303, %v252, 0
        %v311 = vsel %vm303, %v253, 0
        %v314 = vsel %vm303, %v254, 0
        %v317 = vsel %vm303, %v255, 0
        %v320 = vsel %vm303, %v256, 0
        %v323 = vsel %vm303, %v257, 0
        %v326 = vsel %vm303, %v258, 0
        %v329 = vsel %vm303, %v259, 0
        %v332 = vsel %vm303, %v260, 0
        %v335 = vsel %vm303, %v261, 0
        %v338 = vsel %vm303, %v262, 0
        %v341 = vsel %vm303, %v263, 0
        %v344 = vsel %vm303, %v264, 0
        %v347 = vsel %vm303, %v265, 0
        %v350 = vsel %vm303, %v266, 0
        %v353 = vsel %vm303, %v267, 0
        %v356 = vsel %vm303, %v268, 0
        %v359 = vsel %vm303, %v269, 0
        %v362 = vsel %vm303, %v270, 0
        %v365 = vsel %vm303, %v271, 0
        %v368 = vsel %vm303, %v272, 0
        %v371 = vsel %vm303, %v273, 0
        %v374 = vsel %vm303, %v274, 0
        %v377 = vsel %vm303, %v275, 0
        %v380 = vsel %vm303, %v276, 0
        %v383 = vsel %vm303, %v277, 0
        %v386 = vsel %vm303, %v278, 0
        %v389 = vsel %vm303, %v279, 0
        %v392 = vsel %vm303, %v280, 0
        %v395 = vsel %vm303, %v281, 0
        %v398 = vsel %vm303, %v282, 0
        %v401 = vsel %vm303, %v283, 0
        %v404 = vsel %vm303, %v284, 0
        %v407 = vsel %vm303, %v285, 0
        %v410 = vsel %vm303, %v286, 0
        %v413 = vsel %vm303, %v287, 0
        %v416 = vsel %vm303, %v288, 0
        %v419 = vsel %vm303, %v289, 0
        %v422 = vsel %vm303, %v290, 0
        %v425 = vsel %vm303, %v291, 0
        %v428 = vsel %vm303, %v292, 0
        %v431 = vsel %vm303, %v293, 0
        %v434 = vsel %vm303, %v294, 0
        %v437 = vsel %vm303, %v295, 0
        %v440 = vsel %vm303, %v296, 0
        %v443 = vsel %vm303, %v297, 0
        %v446 = vsel %vm303, %v298, 0
        %vm448 = vcmask 1043456
        %v449 = vsel %vm448, %v301, 0
        %v451 = vsel %vm448, %v302, 0
        %453 = vmatpush.msra.mxu0 0.0
        %454 = vmatpush.msra.mxu0 0.0
        %455 = vmatpush.msra.mxu0 0.0
        %456 = vmatpush.msra.mxu0 0.0
        %457 = vmatpush.msra.mxu0 0.0
        %458 = vmatpush.msra.mxu0 0.0
        %459 = vmatpush.msra.mxu0 0.0
        %460 = vmatpush.msra.mxu0 0.0
        %461 = vmatpush.msra.mxu0 0.0
        %462 = vmatpush.msra.mxu0 0.0
        %463 = vmatpush.msra.mxu0 0.0
        %464 = vmatpush.msra.mxu0 0.0
        %465 = vmatpush.msra.mxu0 0.0
        %466 = vmatpush.msra.mxu0 0.0
        %467 = vmatpush.msra.mxu0 0.0
        %468 = vmatpush.msra.mxu0 %v449
        %469 = vmatmul.f32.gmra.mxu0 %v305
        %v470 = vpop.f32.mrf.mxu0
        %v471 = vadd.f32 0.0, %v470
        %472 = vmatmul.f32.gmra.mxu0 %v308
        %v473 = vpop.f32.mrf.mxu0
        %v474 = vadd.f32 0.0, %v473
        %475 = vmatmul.f32.gmra.mxu0 %v311
        %v476 = vpop.f32.mrf.mxu0
        %v477 = vadd.f32 0.0, %v476
        %478 = vmatmul.f32.gmra.mxu0 %v314
        %v479 = vpop.f32.mrf.mxu0
        %v480 = vadd.f32 0.0, %v479
        %481 = vmatmul.f32.gmra.mxu0 %v317
        %v482 = vpop.f32.mrf.mxu0
        %v483 = vadd.f32 0.0, %v482
        %484 = vmatmul.f32.gmra.mxu0 %v320
        %v485 = vpop.f32.mrf.mxu0
        %v486 = vadd.f32 0.0, %v485
        %487 = vmatmul.f32.gmra.mxu0 %v323
        %v488 = vpop.f32.mrf.mxu0
        %v489 = vadd.f32 0.0, %v488
        %490 = vmatmul.f32.gmra.mxu0 %v326
        %v491 = vpop.f32.mrf.mxu0
        %v492 = vadd.f32 0.0, %v491
        %493 = vmatmul.f32.gmra.mxu0 %v329
        %v494 = vpop.f32.mrf.mxu0
        %v495 = vadd.f32 0.0, %v494
        %496 = vmatmul.f32.gmra.mxu0 %v332
        %v497 = vpop.f32.mrf.mxu0
        %v498 = vadd.f32 0.0, %v497
        %499 = vmatmul.f32.gmra.mxu0 %v335
        %v500 = vpop.f32.mrf.mxu0
        %v501 = vadd.f32 0.0, %v500
        %502 = vmatmul.f32.gmra.mxu0 %v338
        %v503 = vpop.f32.mrf.mxu0
        %v504 = vadd.f32 0.0, %v503
        %505 = vmatmul.f32.gmra.mxu0 %v341
        %v506 = vpop.f32.mrf.mxu0
        %v507 = vadd.f32 0.0, %v506
        %508 = vmatmul.f32.gmra.mxu0 %v344
        %v509 = vpop.f32.mrf.mxu0
        %v510 = vadd.f32 0.0, %v509
        %511 = vmatmul.f32.gmra.mxu0 %v347
        %v512 = vpop.f32.mrf.mxu0
        %v513 = vadd.f32 0.0, %v512
        %514 = vmatmul.f32.gmra.mxu0 %v350
        %v515 = vpop.f32.mrf.mxu0
        %v516 = vadd.f32 0.0, %v515
        %517 = vmatmul.f32.gmra.mxu0 %v353
        %v518 = vpop.f32.mrf.mxu0
        %v519 = vadd.f32 0.0, %v518
        %520 = vmatmul.f32.gmra.mxu0 %v356
        %v521 = vpop.f32.mrf.mxu0
        %v522 = vadd.f32 0.0, %v521
        %523 = vmatmul.f32.gmra.mxu0 %v359
        %v524 = vpop.f32.mrf.mxu0
        %v525 = vadd.f32 0.0, %v524
        %526 = vmatmul.f32.gmra.mxu0 %v362
        %v527 = vpop.f32.mrf.mxu0
        %v528 = vadd.f32 0.0, %v527
        %529 = vmatmul.f32.gmra.mxu0 %v365
        %v530 = vpop.f32.mrf.mxu0
        %v531 = vadd.f32 0.0, %v530
        %532 = vmatmul.f32.gmra.mxu0 %v368
        %v533 = vpop.f32.mrf.mxu0
        %v534 = vadd.f32 0.0, %v533
        %535 = vmatmul.f32.gmra.mxu0 %v371
        %v536 = vpop.f32.mrf.mxu0
        %v537 = vadd.f32 0.0, %v536
        %538 = vmatmul.f32.gmra.mxu0 %v374
        %v539 = vpop.f32.mrf.mxu0
        %v540 = vadd.f32 0.0, %v539
        %541 = vmatmul.f32.gmra.mxu0 %v377
        %v542 = vpop.f32.mrf.mxu0
        %v543 = vadd.f32 0.0, %v542
        %544 = vmatmul.f32.gmra.mxu0 %v380
        %v545 = vpop.f32.mrf.mxu0
        %v546 = vadd.f32 0.0, %v545
        %547 = vmatmul.f32.gmra.mxu0 %v383
        %v548 = vpop.f32.mrf.mxu0
        %v549 = vadd.f32 0.0, %v548
        %550 = vmatmul.f32.gmra.mxu0 %v386
        %v551 = vpop.f32.mrf.mxu0
        %v552 = vadd.f32 0.0, %v551
        %553 = vmatmul.f32.gmra.mxu0 %v389
        %v554 = vpop.f32.mrf.mxu0
        %v555 = vadd.f32 0.0, %v554
        %556 = vmatmul.f32.gmra.mxu0 %v392
        %v557 = vpop.f32.mrf.mxu0
        %v558 = vadd.f32 0.0, %v557
        %559 = vmatmul.f32.gmra.mxu0 %v395
        %v560 = vpop.f32.mrf.mxu0
        %v561 = vadd.f32 0.0, %v560
        %562 = vmatmul.f32.gmra.mxu0 %v398
        %v563 = vpop.f32.mrf.mxu0
        %v564 = vadd.f32 0.0, %v563
        %565 = vmatmul.f32.gmra.mxu0 %v401
        %v566 = vpop.f32.mrf.mxu0
        %v567 = vadd.f32 0.0, %v566
        %568 = vmatmul.f32.gmra.mxu0 %v404
        %v569 = vpop.f32.mrf.mxu0
        %v570 = vadd.f32 0.0, %v569
        %571 = vmatmul.f32.gmra.mxu0 %v407
        %v572 = vpop.f32.mrf.mxu0
        %v573 = vadd.f32 0.0, %v572
        %574 = vmatmul.f32.gmra.mxu0 %v410
        %v575 = vpop.f32.mrf.mxu0
        %v576 = vadd.f32 0.0, %v575
        %577 = vmatmul.f32.gmra.mxu0 %v413
        %v578 = vpop.f32.mrf.mxu0
        %v579 = vadd.f32 0.0, %v578
        %580 = vmatmul.f32.gmra.mxu0 %v416
        %v581 = vpop.f32.mrf.mxu0
        %v582 = vadd.f32 0.0, %v581
        %583 = vmatmul.f32.gmra.mxu0 %v419
        %v584 = vpop.f32.mrf.mxu0
        %v585 = vadd.f32 0.0, %v584
        %586 = vmatmul.f32.gmra.mxu0 %v422
        %v587 = vpop.f32.mrf.mxu0
        %v588 = vadd.f32 0.0, %v587
        %589 = vmatmul.f32.gmra.mxu0 %v425
        %v590 = vpop.f32.mrf.mxu0
        %v591 = vadd.f32 0.0, %v590
        %592 = vmatmul.f32.gmra.mxu0 %v428
        %v593 = vpop.f32.mrf.mxu0
        %v594 = vadd.f32 0.0, %v593
        %595 = vmatmul.f32.gmra.mxu0 %v431
        %v596 = vpop.f32.mrf.mxu0
        %v597 = vadd.f32 0.0, %v596
        %598 = vmatmul.f32.gmra.mxu0 %v434
        %v599 = vpop.f32.mrf.mxu0
        %v600 = vadd.f32 0.0, %v599
        %601 = vmatmul.f32.gmra.mxu0 %v437
        %v602 = vpop.f32.mrf.mxu0
        %v603 = vadd.f32 0.0, %v602
        %604 = vmatmul.f32.gmra.mxu0 %v440
        %v605 = vpop.f32.mrf.mxu0
        %v606 = vadd.f32 0.0, %v605
        %607 = vmatmul.f32.gmra.mxu0 %v443
        %v608 = vpop.f32.mrf.mxu0
        %v609 = vadd.f32 0.0, %v608
        %610 = vmatmul.f32.gmra.mxu0 %v446
        %v611 = vpop.f32.mrf.mxu0
        %v612 = vadd.f32 0.0, %v611
        %613 = vdwg.mxu0
        %614 = vmatpush.msra.mxu0 0.0
        %615 = vmatpush.msra.mxu0 0.0
        %616 = vmatpush.msra.mxu0 0.0
        %617 = vmatpush.msra.mxu0 0.0
        %618 = vmatpush.msra.mxu0 0.0
        %619 = vmatpush.msra.mxu0 0.0
        %620 = vmatpush.msra.mxu0 0.0
        %621 = vmatpush.msra.mxu0 0.0
        %622 = vmatpush.msra.mxu0 0.0
        %623 = vmatpush.msra.mxu0 0.0
        %624 = vmatpush.msra.mxu0 0.0
        %625 = vmatpush.msra.mxu0 0.0
        %626 = vmatpush.msra.mxu0 0.0
        %627 = vmatpush.msra.mxu0 0.0
        %628 = vmatpush.msra.mxu0 0.0
        %629 = vmatpush.msra.mxu0 %v451
        %630 = vmatmul.f32.gmra.mxu0 %v305
        %v631 = vpop.f32.mrf.mxu0
        %v632 = vadd.f32 0.0, %v631
        %633 = vmatmul.f32.gmra.mxu0 %v308
        %v634 = vpop.f32.mrf.mxu0
        %v635 = vadd.f32 0.0, %v634
        %636 = vmatmul.f32.gmra.mxu0 %v311
        %v637 = vpop.f32.mrf.mxu0
        %v638 = vadd.f32 0.0, %v637
        %639 = vmatmul.f32.gmra.mxu0 %v314
        %v640 = vpop.f32.mrf.mxu0
        %v641 = vadd.f32 0.0, %v640
        %642 = vmatmul.f32.gmra.mxu0 %v317
        %v643 = vpop.f32.mrf.mxu0
        %v644 = vadd.f32 0.0, %v643
        %645 = vmatmul.f32.gmra.mxu0 %v320
        %v646 = vpop.f32.mrf.mxu0
        %v647 = vadd.f32 0.0, %v646
        %648 = vmatmul.f32.gmra.mxu0 %v323
        %v649 = vpop.f32.mrf.mxu0
        %v650 = vadd.f32 0.0, %v649
        %651 = vmatmul.f32.gmra.mxu0 %v326
        %v652 = vpop.f32.mrf.mxu0
        %v653 = vadd.f32 0.0, %v652
        %654 = vmatmul.f32.gmra.mxu0 %v329
        %v655 = vpop.f32.mrf.mxu0
        %v656 = vadd.f32 0.0, %v655
        %657 = vmatmul.f32.gmra.mxu0 %v332
        %v658 = vpop.f32.mrf.mxu0
        %v659 = vadd.f32 0.0, %v658
        %660 = vmatmul.f32.gmra.mxu0 %v335
        %v661 = vpop.f32.mrf.mxu0
        %v662 = vadd.f32 0.0, %v661
        %663 = vmatmul.f32.gmra.mxu0 %v338
        %v664 = vpop.f32.mrf.mxu0
        %v665 = vadd.f32 0.0, %v664
        %666 = vmatmul.f32.gmra.mxu0 %v341
        %v667 = vpop.f32.mrf.mxu0
        %v668 = vadd.f32 0.0, %v667
        %669 = vmatmul.f32.gmra.mxu0 %v344
        %v670 = vpop.f32.mrf.mxu0
        %v671 = vadd.f32 0.0, %v670
        %672 = vmatmul.f32.gmra.mxu0 %v347
        %v673 = vpop.f32.mrf.mxu0
        %v674 = vadd.f32 0.0, %v673
        %675 = vmatmul.f32.gmra.mxu0 %v350
        %v676 = vpop.f32.mrf.mxu0
        %v677 = vadd.f32 0.0, %v676
        %678 = vmatmul.f32.gmra.mxu0 %v353
        %v679 = vpop.f32.mrf.mxu0
        %v680 = vadd.f32 0.0, %v679
        %681 = vmatmul.f32.gmra.mxu0 %v356
        %v682 = vpop.f32.mrf.mxu0
        %v683 = vadd.f32 0.0, %v682
        %684 = vmatmul.f32.gmra.mxu0 %v359
        %v685 = vpop.f32.mrf.mxu0
        %v686 = vadd.f32 0.0, %v685
        %687 = vmatmul.f32.gmra.mxu0 %v362
        %v688 = vpop.f32.mrf.mxu0
        %v689 = vadd.f32 0.0, %v688
        %690 = vmatmul.f32.gmra.mxu0 %v365
        %v691 = vpop.f32.mrf.mxu0
        %v692 = vadd.f32 0.0, %v691
        %693 = vmatmul.f32.gmra.mxu0 %v368
        %v694 = vpop.f32.mrf.mxu0
        %v695 = vadd.f32 0.0, %v694
        %696 = vmatmul.f32.gmra.mxu0 %v371
        %v697 = vpop.f32.mrf.mxu0
        %v698 = vadd.f32 0.0, %v697
        %699 = vmatmul.f32.gmra.mxu0 %v374
        %v700 = vpop.f32.mrf.mxu0
        %v701 = vadd.f32 0.0, %v700
        %702 = vmatmul.f32.gmra.mxu0 %v377
        %v703 = vpop.f32.mrf.mxu0
        %v704 = vadd.f32 0.0, %v703
        %705 = vmatmul.f32.gmra.mxu0 %v380
        %v706 = vpop.f32.mrf.mxu0
        %v707 = vadd.f32 0.0, %v706
        %708 = vmatmul.f32.gmra.mxu0 %v383
        %v709 = vpop.f32.mrf.mxu0
        %v710 = vadd.f32 0.0, %v709
        %711 = vmatmul.f32.gmra.mxu0 %v386
        %v712 = vpop.f32.mrf.mxu0
        %v713 = vadd.f32 0.0, %v712
        %714 = vmatmul.f32.gmra.mxu0 %v389
        %v715 = vpop.f32.mrf.mxu0
        %v716 = vadd.f32 0.0, %v715
        %717 = vmatmul.f32.gmra.mxu0 %v392
        %v718 = vpop.f32.mrf.mxu0
        %v719 = vadd.f32 0.0, %v718
        %720 = vmatmul.f32.gmra.mxu0 %v395
        %v721 = vpop.f32.mrf.mxu0
        %v722 = vadd.f32 0.0, %v721
        %723 = vmatmul.f32.gmra.mxu0 %v398
        %v724 = vpop.f32.mrf.mxu0
        %v725 = vadd.f32 0.0, %v724
        %726 = vmatmul.f32.gmra.mxu0 %v401
        %v727 = vpop.f32.mrf.mxu0
        %v728 = vadd.f32 0.0, %v727
        %729 = vmatmul.f32.gmra.mxu0 %v404
        %v730 = vpop.f32.mrf.mxu0
        %v731 = vadd.f32 0.0, %v730
        %732 = vmatmul.f32.gmra.mxu0 %v407
        %v733 = vpop.f32.mrf.mxu0
        %v734 = vadd.f32 0.0, %v733
        %735 = vmatmul.f32.gmra.mxu0 %v410
        %v736 = vpop.f32.mrf.mxu0
        %v737 = vadd.f32 0.0, %v736
        %738 = vmatmul.f32.gmra.mxu0 %v413
        %v739 = vpop.f32.mrf.mxu0
        %v740 = vadd.f32 0.0, %v739
        %741 = vmatmul.f32.gmra.mxu0 %v416
        %v742 = vpop.f32.mrf.mxu0
        %v743 = vadd.f32 0.0, %v742
        %744 = vmatmul.f32.gmra.mxu0 %v419
        %v745 = vpop.f32.mrf.mxu0
        %v746 = vadd.f32 0.0, %v745
        %747 = vmatmul.f32.gmra.mxu0 %v422
        %v748 = vpop.f32.mrf.mxu0
        %v749 = vadd.f32 0.0, %v748
        %750 = vmatmul.f32.gmra.mxu0 %v425
        %v751 = vpop.f32.mrf.mxu0
        %v752 = vadd.f32 0.0, %v751
        %753 = vmatmul.f32.gmra.mxu0 %v428
        %v754 = vpop.f32.mrf.mxu0
        %v755 = vadd.f32 0.0, %v754
        %756 = vmatmul.f32.gmra.mxu0 %v431
        %v757 = vpop.f32.mrf.mxu0
        %v758 = vadd.f32 0.0, %v757
        %759 = vmatmul.f32.gmra.mxu0 %v434
        %v760 = vpop.f32.mrf.mxu0
        %v761 = vadd.f32 0.0, %v760
        %762 = vmatmul.f32.gmra.mxu0 %v437
        %v763 = vpop.f32.mrf.mxu0
        %v764 = vadd.f32 0.0, %v763
        %765 = vmatmul.f32.gmra.mxu0 %v440
        %v766 = vpop.f32.mrf.mxu0
        %v767 = vadd.f32 0.0, %v766
        %768 = vmatmul.f32.gmra.mxu0 %v443
        %v769 = vpop.f32.mrf.mxu0
        %v770 = vadd.f32 0.0, %v769
        %771 = vmatmul.f32.gmra.mxu0 %v446
        %v772 = vpop.f32.mrf.mxu0
        %v773 = vadd.f32 0.0, %v772
        %774 = vdwg.mxu0
        %v775 = vmax.f32 %v471, %v474
        %v776 = vmax.f32 %v775, %v477
        %v777 = vmax.f32 %v776, %v480
        %v778 = vrot.slane %v777, 4
        %v779 = vmax.f32 %v777, %v778
        %v780 = vrot.slane %v779, 2
        %v781 = vmax.f32 %v779, %v780
        %v782 = vrot.slane %v781, 1
        %v783 = vmax.f32 %v781, %v782
        %v784 = vmax.f32 %v632, %v635
        %v785 = vmax.f32 %v784, %v638
        %v786 = vmax.f32 %v785, %v641
        %v787 = vrot.slane %v786, 4
        %v788 = vmax.f32 %v786, %v787
        %v789 = vrot.slane %v788, 2
        %v790 = vmax.f32 %v788, %v789
        %v791 = vrot.slane %v790, 1
        %v792 = vmax.f32 %v790, %v791
        %v793 = vmax.f32 %v483, %v486
        %v794 = vmax.f32 %v793, %v489
        %v795 = vmax.f32 %v794, %v492
        %v796 = vrot.slane %v795, 4
        %v797 = vmax.f32 %v795, %v796
        %v798 = vrot.slane %v797, 2
        %v799 = vmax.f32 %v797, %v798
        %v800 = vrot.slane %v799, 1
        %v801 = vmax.f32 %v799, %v800
        %v802 = vmax.f32 %v644, %v647
        %v803 = vmax.f32 %v802, %v650
        %v804 = vmax.f32 %v803, %v653
        %v805 = vrot.slane %v804, 4
        %v806 = vmax.f32 %v804, %v805
        %v807 = vrot.slane %v806, 2
        %v808 = vmax.f32 %v806, %v807
        %v809 = vrot.slane %v808, 1
        %v810 = vmax.f32 %v808, %v809
        %v811 = vmax.f32 %v495, %v498
        %v812 = vmax.f32 %v811, %v501
        %v813 = vmax.f32 %v812, %v504
        %v814 = vrot.slane %v813, 4
        %v815 = vmax.f32 %v813, %v814
        %v816 = vrot.slane %v815, 2
        %v817 = vmax.f32 %v815, %v816
        %v818 = vrot.slane %v817, 1
        %v819 = vmax.f32 %v817, %v818
        %v820 = vmax.f32 %v656, %v659
        %v821 = vmax.f32 %v820, %v662
        %v822 = vmax.f32 %v821, %v665
        %v823 = vrot.slane %v822, 4
        %v824 = vmax.f32 %v822, %v823
        %v825 = vrot.slane %v824, 2
        %v826 = vmax.f32 %v824, %v825
        %v827 = vrot.slane %v826, 1
        %v828 = vmax.f32 %v826, %v827
        %v829 = vmax.f32 %v507, %v510
        %v830 = vmax.f32 %v829, %v513
        %v831 = vmax.f32 %v830, %v516
        %v832 = vrot.slane %v831, 4
        %v833 = vmax.f32 %v831, %v832
        %v834 = vrot.slane %v833, 2
        %v835 = vmax.f32 %v833, %v834
        %v836 = vrot.slane %v835, 1
        %v837 = vmax.f32 %v835, %v836
        %v838 = vmax.f32 %v668, %v671
        %v839 = vmax.f32 %v838, %v674
        %v840 = vmax.f32 %v839, %v677
        %v841 = vrot.slane %v840, 4
        %v842 = vmax.f32 %v840, %v841
        %v843 = vrot.slane %v842, 2
        %v844 = vmax.f32 %v842, %v843
        %v845 = vrot.slane %v844, 1
        %v846 = vmax.f32 %v844, %v845
        %v847 = vsub.f32 %v471, %v783
        %v848 = vsub.f32 %v632, %v792
        %v849 = vsub.f32 %v474, %v783
        %v850 = vsub.f32 %v635, %v792
        %v851 = vsub.f32 %v477, %v783
        %v852 = vsub.f32 %v638, %v792
        %v853 = vsub.f32 %v480, %v783
        %v854 = vsub.f32 %v641, %v792
        %v855 = vsub.f32 %v483, %v801
        %v856 = vsub.f32 %v644, %v810
        %v857 = vsub.f32 %v486, %v801
        %v858 = vsub.f32 %v647, %v810
        %v859 = vsub.f32 %v489, %v801
        %v860 = vsub.f32 %v650, %v810
        %v861 = vsub.f32 %v492, %v801
        %v862 = vsub.f32 %v653, %v810
        %v863 = vsub.f32 %v495, %v819
        %v864 = vsub.f32 %v656, %v828
        %v865 = vsub.f32 %v498, %v819
        %v866 = vsub.f32 %v659, %v828
        %v867 = vsub.f32 %v501, %v819
        %v868 = vsub.f32 %v662, %v828
        %v869 = vsub.f32 %v504, %v819
        %v870 = vsub.f32 %v665, %v828
        %v871 = vsub.f32 %v507, %v837
        %v872 = vsub.f32 %v668, %v846
        %v873 = vsub.f32 %v510, %v837
        %v874 = vsub.f32 %v671, %v846
        %v875 = vsub.f32 %v513, %v837
        %v876 = vsub.f32 %v674, %v846
        %v877 = vsub.f32 %v516, %v837
        %v878 = vsub.f32 %v677, %v846
        %v879 = vmul.f32 %v847, 1.442695
        %v880 = vpow.pop %v879
        %v881 = vmul.f32 %v848, 1.442695
        %v882 = vpow.pop %v881
        %v883 = vmul.f32 %v849, 1.442695
        %v884 = vpow.pop %v883
        %v885 = vmul.f32 %v850, 1.442695
        %v886 = vpow.pop %v885
        %v887 = vmul.f32 %v851, 1.442695
        %v888 = vpow.pop %v887
        %v889 = vmul.f32 %v852, 1.442695
        %v890 = vpow.pop %v889
        %v891 = vmul.f32 %v853, 1.442695
        %v892 = vpow.pop %v891
        %v893 = vmul.f32 %v854, 1.442695
        %v894 = vpow.pop %v893
        %v895 = vmul.f32 %v855, 1.442695
        %v896 = vpow.pop %v895
        %v897 = vmul.f32 %v856, 1.442695
        %v898 = vpow.pop %v897
        %v899 = vmul.f32 %v857, 1.442695
        %v900 = vpow.pop %v899
        %v901 = vmul.f32 %v858, 1.442695
        %v902 = vpow.pop %v901
        %v903 = vmul.f32 %v859, 1.442695
        %v904 = vpow.pop %v903
        %v905 = vmul.f32 %v860, 1.442695
        %v906 = vpow.pop %v905
        %v907 = vmul.f32 %v861, 1.442695
        %v908 = vpow.pop %v907
        %v909 = vmul.f32 %v862, 1.442695
        %v910 = vpow.pop %v909
        %v911 = vmul.f32 %v863, 1.442695
        %v912 = vpow.pop %v911
        %v913 = vmul.f32 %v864, 1.442695
        %v914 = vpow.pop %v913
        %v915 = vmul.f32 %v865, 1.442695
        %v916 = vpow.pop %v915
        %v917 = vmul.f32 %v866, 1.442695
        %v918 = vpow.pop %v917
        %v919 = vmul.f32 %v867, 1.442695
        %v920 = vpow.pop %v919
        %v921 = vmul.f32 %v868, 1.442695
        %v922 = vpow.pop %v921
        %v923 = vmul.f32 %v869, 1.442695
        %v924 = vpow.pop %v923
        %v925 = vmul.f32 %v870, 1.442695
        %v926 = vpow.pop %v925
        %v927 = vmul.f32 %v871, 1.442695
        %v928 = vpow.pop %v927
        %v929 = vmul.f32 %v872, 1.442695
        %v930 = vpow.pop %v929
        %v931 = vmul.f32 %v873, 1.442695
        %v932 = vpow.pop %v931
        %v933 = vmul.f32 %v874, 1.442695
        %v934 = vpow.pop %v933
        %v935 = vmul.f32 %v875, 1.442695
        %v936 = vpow.pop %v935
        %v937 = vmul.f32 %v876, 1.442695
        %v938 = vpow.pop %v937
        %v939 = vmul.f32 %v877, 1.442695
        %v940 = vpow.pop %v939
        %v941 = vmul.f32 %v878, 1.442695
        %v942 = vpow.pop %v941
        %v943 = vadd.f32 %v880, %v884
        %v944 = vadd.f32 %v943, %v888
        %v945 = vadd.f32 %v944, %v892
        %v946 = vrot.slane %v945, 4
        %v947 = vadd.f32 %v945, %v946
        %v948 = vrot.slane %v947, 2
        %v949 = vadd.f32 %v947, %v948
        %v950 = vrot.slane %v949, 1
        %v951 = vadd.f32 %v949, %v950
        %v952 = vadd.f32 %v882, %v886
        %v953 = vadd.f32 %v952, %v890
        %v954 = vadd.f32 %v953, %v894
        %v955 = vrot.slane %v954, 4
        %v956 = vadd.f32 %v954, %v955
        %v957 = vrot.slane %v956, 2
        %v958 = vadd.f32 %v956, %v957
        %v959 = vrot.slane %v958, 1
        %v960 = vadd.f32 %v958, %v959
        %v961 = vadd.f32 %v896, %v900
        %v962 = vadd.f32 %v961, %v904
        %v963 = vadd.f32 %v962, %v908
        %v964 = vrot.slane %v963, 4
        %v965 = vadd.f32 %v963, %v964
        %v966 = vrot.slane %v965, 2
        %v967 = vadd.f32 %v965, %v966
        %v968 = vrot.slane %v967, 1
        %v969 = vadd.f32 %v967, %v968
        %v970 = vadd.f32 %v898, %v902
        %v971 = vadd.f32 %v970, %v906
        %v972 = vadd.f32 %v971, %v910
        %v973 = vrot.slane %v972, 4
        %v974 = vadd.f32 %v972, %v973
        %v975 = vrot.slane %v974, 2
        %v976 = vadd.f32 %v974, %v975
        %v977 = vrot.slane %v976, 1
        %v978 = vadd.f32 %v976, %v977
        %v979 = vadd.f32 %v912, %v916
        %v980 = vadd.f32 %v979, %v920
        %v981 = vadd.f32 %v980, %v924
        %v982 = vrot.slane %v981, 4
        %v983 = vadd.f32 %v981, %v982
        %v984 = vrot.slane %v983, 2
        %v985 = vadd.f32 %v983, %v984
        %v986 = vrot.slane %v985, 1
        %v987 = vadd.f32 %v985, %v986
        %v988 = vadd.f32 %v914, %v918
        %v989 = vadd.f32 %v988, %v922
        %v990 = vadd.f32 %v989, %v926
        %v991 = vrot.slane %v990, 4
        %v992 = vadd.f32 %v990, %v991
        %v993 = vrot.slane %v992, 2
        %v994 = vadd.f32 %v992, %v993
        %v995 = vrot.slane %v994, 1
        %v996 = vadd.f32 %v994, %v995
        %v997 = vadd.f32 %v928, %v932
        %v998 = vadd.f32 %v997, %v936
        %v999 = vadd.f32 %v998, %v940
        %v1000 = vrot.slane %v999, 4
        %v1001 = vadd.f32 %v999, %v1000
        %v1002 = vrot.slane %v1001, 2
        %v1003 = vadd.f32 %v1001, %v1002
        %v1004 = vrot.slane %v1003, 1
        %v1005 = vadd.f32 %v1003, %v1004
        %v1006 = vadd.f32 %v930, %v934
        %v1007 = vadd.f32 %v1006, %v938
        %v1008 = vadd.f32 %v1007, %v942
        %v1009 = vrot.slane %v1008, 4
        %v1010 = vadd.f32 %v1008, %v1009
        %v1011 = vrot.slane %v1010, 2
        %v1012 = vadd.f32 %v1010, %v1011
        %v1013 = vrot.slane %v1012, 1
        %v1014 = vadd.f32 %v1012, %v1013
        %v1015 = vrcp.pop %v951
        %v1016 = vmul.f32 %v951, %v1015
        %v1017 = vsub.f32 1.0, %v1016
        %v1018 = vmul.f32 %v1015, %v1017
        %v1019 = vadd.f32 %v1015, %v1018
        %vm1020 = vweird.f32 %v951
        %vm1021 = vweird.f32 %v1015
        %vm1022 = vmor %vm1020, %vm1021
        %v1023 = vsel %vm1022, %v1015, %v1019
        %v1024 = vand.u32 2147483647, %v951
        %vm1025 = vcmp.eq.f32.partialorder %v1024, 8.507059e+37
        %v1026 = vand.u32 %v951, 2147483648
        %v1027 = vor.u32 1.1754944e-38, %v1026
        %v1028 = vsel %vm1025, %v1027, %v1023
        %v1029 = vmul.f32 %v880, %v1028
        %v1030 = vrcp.pop %v960
        %v1031 = vmul.f32 %v960, %v1030
        %v1032 = vsub.f32 1.0, %v1031
        %v1033 = vmul.f32 %v1030, %v1032
        %v1034 = vadd.f32 %v1030, %v1033
        %vm1035 = vweird.f32 %v960
        %vm1036 = vweird.f32 %v1030
        %vm1037 = vmor %vm1035, %vm1036
        %v1038 = vsel %vm1037, %v1030, %v1034
        %v1039 = vand.u32 2147483647, %v960
        %vm1040 = vcmp.eq.f32.partialorder %v1039, 8.507059e+37
        %v1041 = vand.u32 %v960, 2147483648
        %v1042 = vor.u32 1.1754944e-38, %v1041
        %v1043 = vsel %vm1040, %v1042, %v1038
        %v1044 = vmul.f32 %v882, %v1043
        %v1045 = vmul.f32 %v884, %v1028
        %v1046 = vmul.f32 %v886, %v1043
        %v1047 = vmul.f32 %v888, %v1028
        %v1048 = vmul.f32 %v890, %v1043
        %v1049 = vmul.f32 %v892, %v1028
        %v1050 = vmul.f32 %v894, %v1043
        %v1051 = vrcp.pop %v969
        %v1052 = vmul.f32 %v969, %v1051
        %v1053 = vsub.f32 1.0, %v1052
        %v1054 = vmul.f32 %v1051, %v1053
        %v1055 = vadd.f32 %v1051, %v1054
        %vm1056 = vweird.f32 %v969
        %vm1057 = vweird.f32 %v1051
        %vm1058 = vmor %vm1056, %vm1057
        %v1059 = vsel %vm1058, %v1051, %v1055
        %v1060 = vand.u32 2147483647, %v969
        %vm1061 = vcmp.eq.f32.partialorder %v1060, 8.507059e+37
        %v1062 = vand.u32 %v969, 2147483648
        %v1063 = vor.u32 1.1754944e-38, %v1062
        %v1064 = vsel %vm1061, %v1063, %v1059
        %v1065 = vmul.f32 %v896, %v1064
        %v1066 = vrcp.pop %v978
        %v1067 = vmul.f32 %v978, %v1066
        %v1068 = vsub.f32 1.0, %v1067
        %v1069 = vmul.f32 %v1066, %v1068
        %v1070 = vadd.f32 %v1066, %v1069
        %vm1071 = vweird.f32 %v978
        %vm1072 = vweird.f32 %v1066
        %vm1073 = vmor %vm1071, %vm1072
        %v1074 = vsel %vm1073, %v1066, %v1070
        %v1075 = vand.u32 2147483647, %v978
        %vm1076 = vcmp.eq.f32.partialorder %v1075, 8.507059e+37
        %v1077 = vand.u32 %v978, 2147483648
        %v1078 = vor.u32 1.1754944e-38, %v1077
        %v1079 = vsel %vm1076, %v1078, %v1074
        %v1080 = vmul.f32 %v898, %v1079
        %v1081 = vmul.f32 %v900, %v1064
        %v1082 = vmul.f32 %v902, %v1079
        %v1083 = vmul.f32 %v904, %v1064
        %v1084 = vmul.f32 %v906, %v1079
        %v1085 = vmul.f32 %v908, %v1064
        %v1086 = vmul.f32 %v910, %v1079
        %v1087 = vrcp.pop %v987
        %v1088 = vmul.f32 %v987, %v1087
        %v1089 = vsub.f32 1.0, %v1088
        %v1090 = vmul.f32 %v1087, %v1089
        %v1091 = vadd.f32 %v1087, %v1090
        %vm1092 = vweird.f32 %v987
        %vm1093 = vweird.f32 %v1087
        %vm1094 = vmor %vm1092, %vm1093
        %v1095 = vsel %vm1094, %v1087, %v1091
        %v1096 = vand.u32 2147483647, %v987
        %vm1097 = vcmp.eq.f32.partialorder %v1096, 8.507059e+37
        %v1098 = vand.u32 %v987, 2147483648
        %v1099 = vor.u32 1.1754944e-38, %v1098
        %v1100 = vsel %vm1097, %v1099, %v1095
        %v1101 = vmul.f32 %v912, %v1100
        %v1102 = vrcp.pop %v996
        %v1103 = vmul.f32 %v996, %v1102
        %v1104 = vsub.f32 1.0, %v1103
        %v1105 = vmul.f32 %v1102, %v1104
        %v1106 = vadd.f32 %v1102, %v1105
        %vm1107 = vweird.f32 %v996
        %vm1108 = vweird.f32 %v1102
        %vm1109 = vmor %vm1107, %vm1108
        %v1110 = vsel %vm1109, %v1102, %v1106
        %v1111 = vand.u32 2147483647, %v996
        %vm1112 = vcmp.eq.f32.partialorder %v1111, 8.507059e+37
        %v1113 = vand.u32 %v996, 2147483648
        %v1114 = vor.u32 1.1754944e-38, %v1113
        %v1115 = vsel %vm1112, %v1114, %v1110
        %v1116 = vmul.f32 %v914, %v1115
        %v1117 = vmul.f32 %v916, %v1100
        %v1118 = vmul.f32 %v918, %v1115
        %v1119 = vmul.f32 %v920, %v1100
        %v1120 = vmul.f32 %v922, %v1115
        %v1121 = vmul.f32 %v924, %v1100
        %v1122 = vmul.f32 %v926, %v1115
        %v1123 = vrcp.pop %v1005
        %v1124 = vmul.f32 %v1005, %v1123
        %v1125 = vsub.f32 1.0, %v1124
        %v1126 = vmul.f32 %v1123, %v1125
        %v1127 = vadd.f32 %v1123, %v1126
        %vm1128 = vweird.f32 %v1005
        %vm1129 = vweird.f32 %v1123
        %vm1130 = vmor %vm1128, %vm1129
        %v1131 = vsel %vm1130, %v1123, %v1127
        %v1132 = vand.u32 2147483647, %v1005
        %vm1133 = vcmp.eq.f32.partialorder %v1132, 8.507059e+37
        %v1134 = vand.u32 %v1005, 2147483648
        %v1135 = vor.u32 1.1754944e-38, %v1134
        %v1136 = vsel %vm1133, %v1135, %v1131
        %v1137 = vmul.f32 %v928, %v1136
        %v1138 = vrcp.pop %v1014
        %v1139 = vmul.f32 %v1014, %v1138
        %v1140 = vsub.f32 1.0, %v1139
        %v1141 = vmul.f32 %v1138, %v1140
        %v1142 = vadd.f32 %v1138, %v1141
        %vm1143 = vweird.f32 %v1014
        %vm1144 = vweird.f32 %v1138
        %vm1145 = vmor %vm1143, %vm1144
        %v1146 = vsel %vm1145, %v1138, %v1142
        %v1147 = vand.u32 2147483647, %v1014
        %vm1148 = vcmp.eq.f32.partialorder %v1147, 8.507059e+37
        %v1149 = vand.u32 %v1014, 2147483648
        %v1150 = vor.u32 1.1754944e-38, %v1149
        %v1151 = vsel %vm1148, %v1150, %v1146
        %v1152 = vmul.f32 %v930, %v1151
        %v1153 = vmul.f32 %v932, %v1136
        %v1154 = vmul.f32 %v934, %v1151
        %v1155 = vmul.f32 %v936, %v1136
        %v1156 = vmul.f32 %v938, %v1151
        %v1157 = vmul.f32 %v940, %v1136
        %v1158 = vmul.f32 %v942, %v1151
        %v1159 = vmul.f32 %v1029, 0.17677669
        %v1160 = vmul.f32 %v1044, 0.17677669
        %v1161 = vmul.f32 %v1045, 0.17677669
        %v1162 = vmul.f32 %v1046, 0.17677669
        %v1163 = vmul.f32 %v1047, 0.17677669
        %v1164 = vmul.f32 %v1048, 0.17677669
        %v1165 = vmul.f32 %v1049, 0.17677669
        %v1166 = vmul.f32 %v1050, 0.17677669
        %v1167 = vmul.f32 %v1065, 0.17677669
        %v1168 = vmul.f32 %v1080, 0.17677669
        %v1169 = vmul.f32 %v1081, 0.17677669
        %v1170 = vmul.f32 %v1082, 0.17677669
        %v1171 = vmul.f32 %v1083, 0.17677669
        %v1172 = vmul.f32 %v1084, 0.17677669
        %v1173 = vmul.f32 %v1085, 0.17677669
        %v1174 = vmul.f32 %v1086, 0.17677669
        %v1175 = vmul.f32 %v1101, 0.17677669
        %v1176 = vmul.f32 %v1116, 0.17677669
        %v1177 = vmul.f32 %v1117, 0.17677669
        %v1178 = vmul.f32 %v1118, 0.17677669
        %v1179 = vmul.f32 %v1119, 0.17677669
        %v1180 = vmul.f32 %v1120, 0.17677669
        %v1181 = vmul.f32 %v1121, 0.17677669
        %v1182 = vmul.f32 %v1122, 0.17677669
        %v1183 = vmul.f32 %v1137, 0.17677669
        %v1184 = vmul.f32 %v1152, 0.17677669
        %v1185 = vmul.f32 %v1153, 0.17677669
        %v1186 = vmul.f32 %v1154, 0.17677669
        %v1187 = vmul.f32 %v1155, 0.17677669
        %v1188 = vmul.f32 %v1156, 0.17677669
        %v1189 = vmul.f32 %v1157, 0.17677669
        %v1190 = vmul.f32 %v1158, 0.17677669
        %v1191 = vmax.f32 %v519, %v680
        %1192 = vmax.xlane.f32.xlu0 %v1191
        %v1193 = vpop.xlane.xlu0 %1192
        %v1194 = vmax.f32 %v522, %v683
        %1195 = vmax.xlane.f32.xlu0 %v1194
        %v1196 = vpop.xlane.xlu0 %1195
        %v1197 = vmax.f32 %v525, %v686
        %1198 = vmax.xlane.f32.xlu0 %v1197
        %v1199 = vpop.xlane.xlu0 %1198
        %v1200 = vmax.f32 %v528, %v689
        %1201 = vmax.xlane.f32.xlu0 %v1200
        %v1202 = vpop.xlane.xlu0 %1201
        %v1203 = vmax.f32 %v531, %v692
        %1204 = vmax.xlane.f32.xlu0 %v1203
        %v1205 = vpop.xlane.xlu0 %1204
        %v1206 = vmax.f32 %v534, %v695
        %1207 = vmax.xlane.f32.xlu0 %v1206
        %v1208 = vpop.xlane.xlu0 %1207
        %v1209 = vmax.f32 %v537, %v698
        %1210 = vmax.xlane.f32.xlu0 %v1209
        %v1211 = vpop.xlane.xlu0 %1210
        %v1212 = vmax.f32 %v540, %v701
        %1213 = vmax.xlane.f32.xlu0 %v1212
        %v1214 = vpop.xlane.xlu0 %1213
        %v1215 = vmax.f32 %v543, %v704
        %1216 = vmax.xlane.f32.xlu0 %v1215
        %v1217 = vpop.xlane.xlu0 %1216
        %v1218 = vmax.f32 %v546, %v707
        %1219 = vmax.xlane.f32.xlu0 %v1218
        %v1220 = vpop.xlane.xlu0 %1219
        %v1221 = vmax.f32 %v549, %v710
        %1222 = vmax.xlane.f32.xlu0 %v1221
        %v1223 = vpop.xlane.xlu0 %1222
        %v1224 = vmax.f32 %v552, %v713
        %1225 = vmax.xlane.f32.xlu0 %v1224
        %v1226 = vpop.xlane.xlu0 %1225
        %v1227 = vmax.f32 %v555, %v716
        %1228 = vmax.xlane.f32.xlu0 %v1227
        %v1229 = vpop.xlane.xlu0 %1228
        %v1230 = vmax.f32 %v558, %v719
        %1231 = vmax.xlane.f32.xlu0 %v1230
        %v1232 = vpop.xlane.xlu0 %1231
        %v1233 = vmax.f32 %v561, %v722
        %1234 = vmax.xlane.f32.xlu0 %v1233
        %v1235 = vpop.xlane.xlu0 %1234
        %v1236 = vmax.f32 %v564, %v725
        %1237 = vmax.xlane.f32.xlu0 %v1236
        %v1238 = vpop.xlane.xlu0 %1237
        %v1239 = vsub.f32 %v519, %v1193
        %v1240 = vsub.f32 %v680, %v1193
        %v1241 = vsub.f32 %v522, %v1196
        %v1242 = vsub.f32 %v683, %v1196
        %v1243 = vsub.f32 %v525, %v1199
        %v1244 = vsub.f32 %v686, %v1199
        %v1245 = vsub.f32 %v528, %v1202
        %v1246 = vsub.f32 %v689, %v1202
        %v1247 = vsub.f32 %v531, %v1205
        %v1248 = vsub.f32 %v692, %v1205
        %v1249 = vsub.f32 %v534, %v1208
        %v1250 = vsub.f32 %v695, %v1208
        %v1251 = vsub.f32 %v537, %v1211
        %v1252 = vsub.f32 %v698, %v1211
        %v1253 = vsub.f32 %v540, %v1214
        %v1254 = vsub.f32 %v701, %v1214
        %v1255 = vsub.f32 %v543, %v1217
        %v1256 = vsub.f32 %v704, %v1217
        %v1257 = vsub.f32 %v546, %v1220
        %v1258 = vsub.f32 %v707, %v1220
        %v1259 = vsub.f32 %v549, %v1223
        %v1260 = vsub.f32 %v710, %v1223
        %v1261 = vsub.f32 %v552, %v1226
        %v1262 = vsub.f32 %v713, %v1226
        %v1263 = vsub.f32 %v555, %v1229
        %v1264 = vsub.f32 %v716, %v1229
        %v1265 = vsub.f32 %v558, %v1232
        %v1266 = vsub.f32 %v719, %v1232
        %v1267 = vsub.f32 %v561, %v1235
        %v1268 = vsub.f32 %v722, %v1235
        %v1269 = vsub.f32 %v564, %v1238
        %v1270 = vsub.f32 %v725, %v1238
        %v1271 = vmul.f32 %v1239, 1.442695
        %v1272 = vpow.pop %v1271
        %v1273 = vmul.f32 %v1240, 1.442695
        %v1274 = vpow.pop %v1273
        %v1275 = vmul.f32 %v1241, 1.442695
        %v1276 = vpow.pop %v1275
        %v1277 = vmul.f32 %v1242, 1.442695
        %v1278 = vpow.pop %v1277
        %v1279 = vmul.f32 %v1243, 1.442695
        %v1280 = vpow.pop %v1279
        %v1281 = vmul.f32 %v1244, 1.442695
        %v1282 = vpow.pop %v1281
        %v1283 = vmul.f32 %v1245, 1.442695
        %v1284 = vpow.pop %v1283
        %v1285 = vmul.f32 %v1246, 1.442695
        %v1286 = vpow.pop %v1285
        %v1287 = vmul.f32 %v1247, 1.442695
        %v1288 = vpow.pop %v1287
        %v1289 = vmul.f32 %v1248, 1.442695
        %v1290 = vpow.pop %v1289
        %v1291 = vmul.f32 %v1249, 1.442695
        %v1292 = vpow.pop %v1291
        %v1293 = vmul.f32 %v1250, 1.442695
        %v1294 = vpow.pop %v1293
        %v1295 = vmul.f32 %v1251, 1.442695
        %v1296 = vpow.pop %v1295
        %v1297 = vmul.f32 %v1252, 1.442695
        %v1298 = vpow.pop %v1297
        %v1299 = vmul.f32 %v1253, 1.442695
        %v1300 = vpow.pop %v1299
        %v1301 = vmul.f32 %v1254, 1.442695
        %v1302 = vpow.pop %v1301
        %v1303 = vmul.f32 %v1255, 1.442695
        %v1304 = vpow.pop %v1303
        %v1305 = vmul.f32 %v1256, 1.442695
        %v1306 = vpow.pop %v1305
        %v1307 = vmul.f32 %v1257, 1.442695
        %v1308 = vpow.pop %v1307
        %v1309 = vmul.f32 %v1258, 1.442695
        %v1310 = vpow.pop %v1309
        %v1311 = vmul.f32 %v1259, 1.442695
        %v1312 = vpow.pop %v1311
        %v1313 = vmul.f32 %v1260, 1.442695
        %v1314 = vpow.pop %v1313
        %v1315 = vmul.f32 %v1261, 1.442695
        %v1316 = vpow.pop %v1315
        %v1317 = vmul.f32 %v1262, 1.442695
        %v1318 = vpow.pop %v1317
        %v1319 = vmul.f32 %v1263, 1.442695
        %v1320 = vpow.pop %v1319
        %v1321 = vmul.f32 %v1264, 1.442695
        %v1322 = vpow.pop %v1321
        %v1323 = vmul.f32 %v1265, 1.442695
        %v1324 = vpow.pop %v1323
        %v1325 = vmul.f32 %v1266, 1.442695
        %v1326 = vpow.pop %v1325
        %v1327 = vmul.f32 %v1267, 1.442695
        %v1328 = vpow.pop %v1327
        %v1329 = vmul.f32 %v1268, 1.442695
        %v1330 = vpow.pop %v1329
        %v1331 = vmul.f32 %v1269, 1.442695
        %v1332 = vpow.pop %v1331
        %v1333 = vmul.f32 %v1270, 1.442695
        %v1334 = vpow.pop %v1333
        %v1335 = vadd.f32 %v1272, %v1274
        %1336 = vadd.xlane.f32.xlu0 %v1335
        %v1337 = vpop.xlane.xlu0 %1336
        %v1338 = vadd.f32 %v1276, %v1278
        %1339 = vadd.xlane.f32.xlu0 %v1338
        %v1340 = vpop.xlane.xlu0 %1339
        %v1341 = vadd.f32 %v1280, %v1282
        %1342 = vadd.xlane.f32.xlu0 %v1341
        %v1343 = vpop.xlane.xlu0 %1342
        %v1344 = vadd.f32 %v1284, %v1286
        %1345 = vadd.xlane.f32.xlu0 %v1344
        %v1346 = vpop.xlane.xlu0 %1345
        %v1347 = vadd.f32 %v1288, %v1290
        %1348 = vadd.xlane.f32.xlu0 %v1347
        %v1349 = vpop.xlane.xlu0 %1348
        %v1350 = vadd.f32 %v1292, %v1294
        %1351 = vadd.xlane.f32.xlu0 %v1350
        %v1352 = vpop.xlane.xlu0 %1351
        %v1353 = vadd.f32 %v1296, %v1298
        %1354 = vadd.xlane.f32.xlu0 %v1353
        %v1355 = vpop.xlane.xlu0 %1354
        %v1356 = vadd.f32 %v1300, %v1302
        %1357 = vadd.xlane.f32.xlu0 %v1356
        %v1358 = vpop.xlane.xlu0 %1357
        %v1359 = vadd.f32 %v1304, %v1306
        %1360 = vadd.xlane.f32.xlu0 %v1359
        %v1361 = vpop.xlane.xlu0 %1360
        %v1362 = vadd.f32 %v1308, %v1310
        %1363 = vadd.xlane.f32.xlu0 %v1362
        %v1364 = vpop.xlane.xlu0 %1363
        %v1365 = vadd.f32 %v1312, %v1314
        %1366 = vadd.xlane.f32.xlu0 %v1365
        %v1367 = vpop.xlane.xlu0 %1366
        %v1368 = vadd.f32 %v1316, %v1318
        %1369 = vadd.xlane.f32.xlu0 %v1368
        %v1370 = vpop.xlane.xlu0 %1369
        %v1371 = vadd.f32 %v1320, %v1322
        %1372 = vadd.xlane.f32.xlu0 %v1371
        %v1373 = vpop.xlane.xlu0 %1372
        %v1374 = vadd.f32 %v1324, %v1326
        %1375 = vadd.xlane.f32.xlu0 %v1374
        %v1376 = vpop.xlane.xlu0 %1375
        %v1377 = vadd.f32 %v1328, %v1330
        %1378 = vadd.xlane.f32.xlu0 %v1377
        %v1379 = vpop.xlane.xlu0 %1378
        %v1380 = vadd.f32 %v1332, %v1334
        %1381 = vadd.xlane.f32.xlu0 %v1380
        %v1382 = vpop.xlane.xlu0 %1381
        %v1383 = vrcp.pop %v1337
        %v1384 = vmul.f32 %v1337, %v1383
        %v1385 = vsub.f32 1.0, %v1384
        %v1386 = vmul.f32 %v1383, %v1385
        %v1387 = vadd.f32 %v1383, %v1386
        %vm1388 = vweird.f32 %v1337
        %vm1389 = vweird.f32 %v1383
        %vm1390 = vmor %vm1388, %vm1389
        %v1391 = vsel %vm1390, %v1383, %v1387
        %v1392 = vand.u32 2147483647, %v1337
        %vm1393 = vcmp.eq.f32.partialorder %v1392, 8.507059e+37
        %v1394 = vand.u32 %v1337, 2147483648
        %v1395 = vor.u32 1.1754944e-38, %v1394
        %v1396 = vsel %vm1393, %v1395, %v1391
        %v1397 = vmul.f32 %v1272, %v1396
        %v1398 = vmul.f32 %v1274, %v1396
        %v1399 = vrcp.pop %v1340
        %v1400 = vmul.f32 %v1340, %v1399
        %v1401 = vsub.f32 1.0, %v1400
        %v1402 = vmul.f32 %v1399, %v1401
        %v1403 = vadd.f32 %v1399, %v1402
        %vm1404 = vweird.f32 %v1340
        %vm1405 = vweird.f32 %v1399
        %vm1406 = vmor %vm1404, %vm1405
        %v1407 = vsel %vm1406, %v1399, %v1403
        %v1408 = vand.u32 2147483647, %v1340
        %vm1409 = vcmp.eq.f32.partialorder %v1408, 8.507059e+37
        %v1410 = vand.u32 %v1340, 2147483648
        %v1411 = vor.u32 1.1754944e-38, %v1410
        %v1412 = vsel %vm1409, %v1411, %v1407
        %v1413 = vmul.f32 %v1276, %v1412
        %v1414 = vmul.f32 %v1278, %v1412
        %v1415 = vrcp.pop %v1343
        %v1416 = vmul.f32 %v1343, %v1415
        %v1417 = vsub.f32 1.0, %v1416
        %v1418 = vmul.f32 %v1415, %v1417
        %v1419 = vadd.f32 %v1415, %v1418
        %vm1420 = vweird.f32 %v1343
        %vm1421 = vweird.f32 %v1415
        %vm1422 = vmor %vm1420, %vm1421
        %v1423 = vsel %vm1422, %v1415, %v1419
        %v1424 = vand.u32 2147483647, %v1343
        %vm1425 = vcmp.eq.f32.partialorder %v1424, 8.507059e+37
        %v1426 = vand.u32 %v1343, 2147483648
        %v1427 = vor.u32 1.1754944e-38, %v1426
        %v1428 = vsel %vm1425, %v1427, %v1423
        %v1429 = vmul.f32 %v1280, %v1428
        %v1430 = vmul.f32 %v1282, %v1428
        %v1431 = vrcp.pop %v1346
        %v1432 = vmul.f32 %v1346, %v1431
        %v1433 = vsub.f32 1.0, %v1432
        %v1434 = vmul.f32 %v1431, %v1433
        %v1435 = vadd.f32 %v1431, %v1434
        %vm1436 = vweird.f32 %v1346
        %vm1437 = vweird.f32 %v1431
        %vm1438 = vmor %vm1436, %vm1437
        %v1439 = vsel %vm1438, %v1431, %v1435
        %v1440 = vand.u32 2147483647, %v1346
        %vm1441 = vcmp.eq.f32.partialorder %v1440, 8.507059e+37
        %v1442 = vand.u32 %v1346, 2147483648
        %v1443 = vor.u32 1.1754944e-38, %v1442
        %v1444 = vsel %vm1441, %v1443, %v1439
        %v1445 = vmul.f32 %v1284, %v1444
        %v1446 = vmul.f32 %v1286, %v1444
        %v1447 = vrcp.pop %v1349
        %v1448 = vmul.f32 %v1349, %v1447
        %v1449 = vsub.f32 1.0, %v1448
        %v1450 = vmul.f32 %v1447, %v1449
        %v1451 = vadd.f32 %v1447, %v1450
        %vm1452 = vweird.f32 %v1349
        %vm1453 = vweird.f32 %v1447
        %vm1454 = vmor %vm1452, %vm1453
        %v1455 = vsel %vm1454, %v1447, %v1451
        %v1456 = vand.u32 2147483647, %v1349
        %vm1457 = vcmp.eq.f32.partialorder %v1456, 8.507059e+37
        %v1458 = vand.u32 %v1349, 2147483648
        %v1459 = vor.u32 1.1754944e-38, %v1458
        %v1460 = vsel %vm1457, %v1459, %v1455
        %v1461 = vmul.f32 %v1288, %v1460
        %v1462 = vmul.f32 %v1290, %v1460
        %v1463 = vrcp.pop %v1352
        %v1464 = vmul.f32 %v1352, %v1463
        %v1465 = vsub.f32 1.0, %v1464
        %v1466 = vmul.f32 %v1463, %v1465
        %v1467 = vadd.f32 %v1463, %v1466
        %vm1468 = vweird.f32 %v1352
        %vm1469 = vweird.f32 %v1463
        %vm1470 = vmor %vm1468, %vm1469
        %v1471 = vsel %vm1470, %v1463, %v1467
        %v1472 = vand.u32 2147483647, %v1352
        %vm1473 = vcmp.eq.f32.partialorder %v1472, 8.507059e+37
        %v1474 = vand.u32 %v1352, 2147483648
        %v1475 = vor.u32 1.1754944e-38, %v1474
        %v1476 = vsel %vm1473, %v1475, %v1471
        %v1477 = vmul.f32 %v1292, %v1476
        %v1478 = vmul.f32 %v1294, %v1476
        %v1479 = vrcp.pop %v1355
        %v1480 = vmul.f32 %v1355, %v1479
        %v1481 = vsub.f32 1.0, %v1480
        %v1482 = vmul.f32 %v1479, %v1481
        %v1483 = vadd.f32 %v1479, %v1482
        %vm1484 = vweird.f32 %v1355
        %vm1485 = vweird.f32 %v1479
        %vm1486 = vmor %vm1484, %vm1485
        %v1487 = vsel %vm1486, %v1479, %v1483
        %v1488 = vand.u32 2147483647, %v1355
        %vm1489 = vcmp.eq.f32.partialorder %v1488, 8.507059e+37
        %v1490 = vand.u32 %v1355, 2147483648
        %v1491 = vor.u32 1.1754944e-38, %v1490
        %v1492 = vsel %vm1489, %v1491, %v1487
        %v1493 = vmul.f32 %v1296, %v1492
        %v1494 = vmul.f32 %v1298, %v1492
        %v1495 = vrcp.pop %v1358
        %v1496 = vmul.f32 %v1358, %v1495
        %v1497 = vsub.f32 1.0, %v1496
        %v1498 = vmul.f32 %v1495, %v1497
        %v1499 = vadd.f32 %v1495, %v1498
        %vm1500 = vweird.f32 %v1358
        %vm1501 = vweird.f32 %v1495
        %vm1502 = vmor %vm1500, %vm1501
        %v1503 = vsel %vm1502, %v1495, %v1499
        %v1504 = vand.u32 2147483647, %v1358
        %vm1505 = vcmp.eq.f32.partialorder %v1504, 8.507059e+37
        %v1506 = vand.u32 %v1358, 2147483648
        %v1507 = vor.u32 1.1754944e-38, %v1506
        %v1508 = vsel %vm1505, %v1507, %v1503
        %v1509 = vmul.f32 %v1300, %v1508
        %v1510 = vmul.f32 %v1302, %v1508
        %v1511 = vrcp.pop %v1361
        %v1512 = vmul.f32 %v1361, %v1511
        %v1513 = vsub.f32 1.0, %v1512
        %v1514 = vmul.f32 %v1511, %v1513
        %v1515 = vadd.f32 %v1511, %v1514
        %vm1516 = vweird.f32 %v1361
        %vm1517 = vweird.f32 %v1511
        %vm1518 = vmor %vm1516, %vm1517
        %v1519 = vsel %vm1518, %v1511, %v1515
        %v1520 = vand.u32 2147483647, %v1361
        %vm1521 = vcmp.eq.f32.partialorder %v1520, 8.507059e+37
        %v1522 = vand.u32 %v1361, 2147483648
        %v1523 = vor.u32 1.1754944e-38, %v1522
        %v1524 = vsel %vm1521, %v1523, %v1519
        %v1525 = vmul.f32 %v1304, %v1524
        %v1526 = vmul.f32 %v1306, %v1524
        %v1527 = vrcp.pop %v1364
        %v1528 = vmul.f32 %v1364, %v1527
        %v1529 = vsub.f32 1.0, %v1528
        %v1530 = vmul.f32 %v1527, %v1529
        %v1531 = vadd.f32 %v1527, %v1530
        %vm1532 = vweird.f32 %v1364
        %vm1533 = vweird.f32 %v1527
        %vm1534 = vmor %vm1532, %vm1533
        %v1535 = vsel %vm1534, %v1527, %v1531
        %v1536 = vand.u32 2147483647, %v1364
        %vm1537 = vcmp.eq.f32.partialorder %v1536, 8.507059e+37
        %v1538 = vand.u32 %v1364, 2147483648
        %v1539 = vor.u32 1.1754944e-38, %v1538
        %v1540 = vsel %vm1537, %v1539, %v1535
        %v1541 = vmul.f32 %v1308, %v1540
        %v1542 = vmul.f32 %v1310, %v1540
        %v1543 = vrcp.pop %v1367
        %v1544 = vmul.f32 %v1367, %v1543
        %v1545 = vsub.f32 1.0, %v1544
        %v1546 = vmul.f32 %v1543, %v1545
        %v1547 = vadd.f32 %v1543, %v1546
        %vm1548 = vweird.f32 %v1367
        %vm1549 = vweird.f32 %v1543
        %vm1550 = vmor %vm1548, %vm1549
        %v1551 = vsel %vm1550, %v1543, %v1547
        %v1552 = vand.u32 2147483647, %v1367
        %vm1553 = vcmp.eq.f32.partialorder %v1552, 8.507059e+37
        %v1554 = vand.u32 %v1367, 2147483648
        %v1555 = vor.u32 1.1754944e-38, %v1554
        %v1556 = vsel %vm1553, %v1555, %v1551
        %v1557 = vmul.f32 %v1312, %v1556
        %v1558 = vmul.f32 %v1314, %v1556
        %v1559 = vrcp.pop %v1370
        %v1560 = vmul.f32 %v1370, %v1559
        %v1561 = vsub.f32 1.0, %v1560
        %v1562 = vmul.f32 %v1559, %v1561
        %v1563 = vadd.f32 %v1559, %v1562
        %vm1564 = vweird.f32 %v1370
        %vm1565 = vweird.f32 %v1559
        %vm1566 = vmor %vm1564, %vm1565
        %v1567 = vsel %vm1566, %v1559, %v1563
        %v1568 = vand.u32 2147483647, %v1370
        %vm1569 = vcmp.eq.f32.partialorder %v1568, 8.507059e+37
        %v1570 = vand.u32 %v1370, 2147483648
        %v1571 = vor.u32 1.1754944e-38, %v1570
        %v1572 = vsel %vm1569, %v1571, %v1567
        %v1573 = vmul.f32 %v1316, %v1572
        %v1574 = vmul.f32 %v1318, %v1572
        %v1575 = vrcp.pop %v1373
        %v1576 = vmul.f32 %v1373, %v1575
        %v1577 = vsub.f32 1.0, %v1576
        %v1578 = vmul.f32 %v1575, %v1577
        %v1579 = vadd.f32 %v1575, %v1578
        %vm1580 = vweird.f32 %v1373
        %vm1581 = vweird.f32 %v1575
        %vm1582 = vmor %vm1580, %vm1581
        %v1583 = vsel %vm1582, %v1575, %v1579
        %v1584 = vand.u32 2147483647, %v1373
        %vm1585 = vcmp.eq.f32.partialorder %v1584, 8.507059e+37
        %v1586 = vand.u32 %v1373, 2147483648
        %v1587 = vor.u32 1.1754944e-38, %v1586
        %v1588 = vsel %vm1585, %v1587, %v1583
        %v1589 = vmul.f32 %v1320, %v1588
        %v1590 = vmul.f32 %v1322, %v1588
        %v1591 = vrcp.pop %v1376
        %v1592 = vmul.f32 %v1376, %v1591
        %v1593 = vsub.f32 1.0, %v1592
        %v1594 = vmul.f32 %v1591, %v1593
        %v1595 = vadd.f32 %v1591, %v1594
        %vm1596 = vweird.f32 %v1376
        %vm1597 = vweird.f32 %v1591
        %vm1598 = vmor %vm1596, %vm1597
        %v1599 = vsel %vm1598, %v1591, %v1595
        %v1600 = vand.u32 2147483647, %v1376
        %vm1601 = vcmp.eq.f32.partialorder %v1600, 8.507059e+37
        %v1602 = vand.u32 %v1376, 2147483648
        %v1603 = vor.u32 1.1754944e-38, %v1602
        %v1604 = vsel %vm1601, %v1603, %v1599
        %v1605 = vmul.f32 %v1324, %v1604
        %v1606 = vmul.f32 %v1326, %v1604
        %v1607 = vrcp.pop %v1379
        %v1608 = vmul.f32 %v1379, %v1607
        %v1609 = vsub.f32 1.0, %v1608
        %v1610 = vmul.f32 %v1607, %v1609
        %v1611 = vadd.f32 %v1607, %v1610
        %vm1612 = vweird.f32 %v1379
        %vm1613 = vweird.f32 %v1607
        %vm1614 = vmor %vm1612, %vm1613
        %v1615 = vsel %vm1614, %v1607, %v1611
        %v1616 = vand.u32 2147483647, %v1379
        %vm1617 = vcmp.eq.f32.partialorder %v1616, 8.507059e+37
        %v1618 = vand.u32 %v1379, 2147483648
        %v1619 = vor.u32 1.1754944e-38, %v1618
        %v1620 = vsel %vm1617, %v1619, %v1615
        %v1621 = vmul.f32 %v1328, %v1620
        %v1622 = vmul.f32 %v1330, %v1620
        %v1623 = vrcp.pop %v1382
        %v1624 = vmul.f32 %v1382, %v1623
        %v1625 = vsub.f32 1.0, %v1624
        %v1626 = vmul.f32 %v1623, %v1625
        %v1627 = vadd.f32 %v1623, %v1626
        %vm1628 = vweird.f32 %v1382
        %vm1629 = vweird.f32 %v1623
        %vm1630 = vmor %vm1628, %vm1629
        %v1631 = vsel %vm1630, %v1623, %v1627
        %v1632 = vand.u32 2147483647, %v1382
        %vm1633 = vcmp.eq.f32.partialorder %v1632, 8.507059e+37
        %v1634 = vand.u32 %v1382, 2147483648
        %v1635 = vor.u32 1.1754944e-38, %v1634
        %v1636 = vsel %vm1633, %v1635, %v1631
        %v1637 = vmul.f32 %v1332, %v1636
        %v1638 = vmul.f32 %v1334, %v1636
        %1639 = vmatpush.xpose.msra.mxu0 0.0
        %1640 = vmatpush.xpose.msra.mxu0 0.0
        %1641 = vmatpush.xpose.msra.mxu0 0.0
        %1642 = vmatpush.xpose.msra.mxu0 0.0
        %1643 = vmatpush.xpose.msra.mxu0 0.0
        %1644 = vmatpush.xpose.msra.mxu0 0.0
        %1645 = vmatpush.xpose.msra.mxu0 0.0
        %1646 = vmatpush.xpose.msra.mxu0 0.0
        %1647 = vmatpush.xpose.msra.mxu0 0.0
        %1648 = vmatpush.xpose.msra.mxu0 0.0
        %1649 = vmatpush.xpose.msra.mxu0 0.0
        %1650 = vmatpush.xpose.msra.mxu0 0.0
        %1651 = vmatpush.xpose.msra.mxu0 %v1445
        %1652 = vmatpush.xpose.msra.mxu0 %v1429
        %1653 = vmatpush.xpose.msra.mxu0 %v1413
        %1654 = vmatpush.xpose.msra.mxu0 %v1397
        %1655 = vmatmul.f32.gmra.mxu0 %v567
        %v1656 = vpop.f32.mrf.mxu0
        %v1657 = vadd.f32 0.0, %v1656
        %1658 = vmatmul.f32.gmra.mxu0 %v570
        %v1659 = vpop.f32.mrf.mxu0
        %v1660 = vadd.f32 0.0, %v1659
        %1661 = vmatmul.f32.gmra.mxu0 %v573
        %v1662 = vpop.f32.mrf.mxu0
        %v1663 = vadd.f32 0.0, %v1662
        %1664 = vmatmul.f32.gmra.mxu0 %v576
        %v1665 = vpop.f32.mrf.mxu0
        %v1666 = vadd.f32 0.0, %v1665
        %1667 = vdwg.mxu0
        %1668 = vmatpush.xpose.msra.mxu0 0.0
        %1669 = vmatpush.xpose.msra.mxu0 0.0
        %1670 = vmatpush.xpose.msra.mxu0 0.0
        %1671 = vmatpush.xpose.msra.mxu0 0.0
        %1672 = vmatpush.xpose.msra.mxu0 0.0
        %1673 = vmatpush.xpose.msra.mxu0 0.0
        %1674 = vmatpush.xpose.msra.mxu0 0.0
        %1675 = vmatpush.xpose.msra.mxu0 0.0
        %1676 = vmatpush.xpose.msra.mxu0 0.0
        %1677 = vmatpush.xpose.msra.mxu0 0.0
        %1678 = vmatpush.xpose.msra.mxu0 0.0
        %1679 = vmatpush.xpose.msra.mxu0 0.0
        %1680 = vmatpush.xpose.msra.mxu0 %v1446
        %1681 = vmatpush.xpose.msra.mxu0 %v1430
        %1682 = vmatpush.xpose.msra.mxu0 %v1414
        %1683 = vmatpush.xpose.msra.mxu0 %v1398
        %1684 = vmatmul.f32.gmra.mxu0 %v728
        %v1685 = vpop.f32.mrf.mxu0
        %v1686 = vadd.f32 %v1657, %v1685
        %1687 = vmatmul.f32.gmra.mxu0 %v731
        %v1688 = vpop.f32.mrf.mxu0
        %v1689 = vadd.f32 %v1660, %v1688
        %1690 = vmatmul.f32.gmra.mxu0 %v734
        %v1691 = vpop.f32.mrf.mxu0
        %v1692 = vadd.f32 %v1663, %v1691
        %1693 = vmatmul.f32.gmra.mxu0 %v737
        %v1694 = vpop.f32.mrf.mxu0
        %v1695 = vadd.f32 %v1666, %v1694
        %1696 = vdwg.mxu0
        %1697 = vmatpush.xpose.msra.mxu0 0.0
        %1698 = vmatpush.xpose.msra.mxu0 0.0
        %1699 = vmatpush.xpose.msra.mxu0 0.0
        %1700 = vmatpush.xpose.msra.mxu0 0.0
        %1701 = vmatpush.xpose.msra.mxu0 0.0
        %1702 = vmatpush.xpose.msra.mxu0 0.0
        %1703 = vmatpush.xpose.msra.mxu0 0.0
        %1704 = vmatpush.xpose.msra.mxu0 0.0
        %1705 = vmatpush.xpose.msra.mxu0 0.0
        %1706 = vmatpush.xpose.msra.mxu0 0.0
        %1707 = vmatpush.xpose.msra.mxu0 0.0
        %1708 = vmatpush.xpose.msra.mxu0 0.0
        %1709 = vmatpush.xpose.msra.mxu0 %v1509
        %1710 = vmatpush.xpose.msra.mxu0 %v1493
        %1711 = vmatpush.xpose.msra.mxu0 %v1477
        %1712 = vmatpush.xpose.msra.mxu0 %v1461
        %1713 = vmatmul.f32.gmra.mxu0 %v579
        %v1714 = vpop.f32.mrf.mxu0
        %v1715 = vadd.f32 0.0, %v1714
        %1716 = vmatmul.f32.gmra.mxu0 %v582
        %v1717 = vpop.f32.mrf.mxu0
        %v1718 = vadd.f32 0.0, %v1717
        %1719 = vmatmul.f32.gmra.mxu0 %v585
        %v1720 = vpop.f32.mrf.mxu0
        %v1721 = vadd.f32 0.0, %v1720
        %1722 = vmatmul.f32.gmra.mxu0 %v588
        %v1723 = vpop.f32.mrf.mxu0
        %v1724 = vadd.f32 0.0, %v1723
        %1725 = vdwg.mxu0
        %1726 = vmatpush.xpose.msra.mxu0 0.0
        %1727 = vmatpush.xpose.msra.mxu0 0.0
        %1728 = vmatpush.xpose.msra.mxu0 0.0
        %1729 = vmatpush.xpose.msra.mxu0 0.0
        %1730 = vmatpush.xpose.msra.mxu0 0.0
        %1731 = vmatpush.xpose.msra.mxu0 0.0
        %1732 = vmatpush.xpose.msra.mxu0 0.0
        %1733 = vmatpush.xpose.msra.mxu0 0.0
        %1734 = vmatpush.xpose.msra.mxu0 0.0
        %1735 = vmatpush.xpose.msra.mxu0 0.0
        %1736 = vmatpush.xpose.msra.mxu0 0.0
        %1737 = vmatpush.xpose.msra.mxu0 0.0
        %1738 = vmatpush.xpose.msra.mxu0 %v1510
        %1739 = vmatpush.xpose.msra.mxu0 %v1494
        %1740 = vmatpush.xpose.msra.mxu0 %v1478
        %1741 = vmatpush.xpose.msra.mxu0 %v1462
        %1742 = vmatmul.f32.gmra.mxu0 %v740
        %v1743 = vpop.f32.mrf.mxu0
        %v1744 = vadd.f32 %v1715, %v1743
        %1745 = vmatmul.f32.gmra.mxu0 %v743
        %v1746 = vpop.f32.mrf.mxu0
        %v1747 = vadd.f32 %v1718, %v1746
        %1748 = vmatmul.f32.gmra.mxu0 %v746
        %v1749 = vpop.f32.mrf.mxu0
        %v1750 = vadd.f32 %v1721, %v1749
        %1751 = vmatmul.f32.gmra.mxu0 %v749
        %v1752 = vpop.f32.mrf.mxu0
        %v1753 = vadd.f32 %v1724, %v1752
        %1754 = vdwg.mxu0
        %1755 = vmatpush.xpose.msra.mxu0 0.0
        %1756 = vmatpush.xpose.msra.mxu0 0.0
        %1757 = vmatpush.xpose.msra.mxu0 0.0
        %1758 = vmatpush.xpose.msra.mxu0 0.0
        %1759 = vmatpush.xpose.msra.mxu0 0.0
        %1760 = vmatpush.xpose.msra.mxu0 0.0
        %1761 = vmatpush.xpose.msra.mxu0 0.0
        %1762 = vmatpush.xpose.msra.mxu0 0.0
        %1763 = vmatpush.xpose.msra.mxu0 0.0
        %1764 = vmatpush.xpose.msra.mxu0 0.0
        %1765 = vmatpush.xpose.msra.mxu0 0.0
        %1766 = vmatpush.xpose.msra.mxu0 0.0
        %1767 = vmatpush.xpose.msra.mxu0 %v1573
        %1768 = vmatpush.xpose.msra.mxu0 %v1557
        %1769 = vmatpush.xpose.msra.mxu0 %v1541
        %1770 = vmatpush.xpose.msra.mxu0 %v1525
        %1771 = vmatmul.f32.gmra.mxu0 %v591
        %v1772 = vpop.f32.mrf.mxu0
        %v1773 = vadd.f32 0.0, %v1772
        %1774 = vmatmul.f32.gmra.mxu0 %v594
        %v1775 = vpop.f32.mrf.mxu0
        %v1776 = vadd.f32 0.0, %v1775
        %1777 = vmatmul.f32.gmra.mxu0 %v597
        %v1778 = vpop.f32.mrf.mxu0
        %v1779 = vadd.f32 0.0, %v1778
        %1780 = vmatmul.f32.gmra.mxu0 %v600
        %v1781 = vpop.f32.mrf.mxu0
        %v1782 = vadd.f32 0.0, %v1781
        %1783 = vdwg.mxu0
        %1784 = vmatpush.xpose.msra.mxu0 0.0
        %1785 = vmatpush.xpose.msra.mxu0 0.0
        %1786 = vmatpush.xpose.msra.mxu0 0.0
        %1787 = vmatpush.xpose.msra.mxu0 0.0
        %1788 = vmatpush.xpose.msra.mxu0 0.0
        %1789 = vmatpush.xpose.msra.mxu0 0.0
        %1790 = vmatpush.xpose.msra.mxu0 0.0
        %1791 = vmatpush.xpose.msra.mxu0 0.0
        %1792 = vmatpush.xpose.msra.mxu0 0.0
        %1793 = vmatpush.xpose.msra.mxu0 0.0
        %1794 = vmatpush.xpose.msra.mxu0 0.0
        %1795 = vmatpush.xpose.msra.mxu0 0.0
        %1796 = vmatpush.xpose.msra.mxu0 %v1574
        %1797 = vmatpush.xpose.msra.mxu0 %v1558
        %1798 = vmatpush.xpose.msra.mxu0 %v1542
        %1799 = vmatpush.xpose.msra.mxu0 %v1526
        %1800 = vmatmul.f32.gmra.mxu0 %v752
        %v1801 = vpop.f32.mrf.mxu0
        %v1802 = vadd.f32 %v1773, %v1801
        %1803 = vmatmul.f32.gmra.mxu0 %v755
        %v1804 = vpop.f32.mrf.mxu0
        %v1805 = vadd.f32 %v1776, %v1804
        %1806 = vmatmul.f32.gmra.mxu0 %v758
        %v1807 = vpop.f32.mrf.mxu0
        %v1808 = vadd.f32 %v1779, %v1807
        %1809 = vmatmul.f32.gmra.mxu0 %v761
        %v1810 = vpop.f32.mrf.mxu0
        %v1811 = vadd.f32 %v1782, %v1810
        %1812 = vdwg.mxu0
        %1813 = vmatpush.xpose.msra.mxu0 0.0
        %1814 = vmatpush.xpose.msra.mxu0 0.0
        %1815 = vmatpush.xpose.msra.mxu0 0.0
        %1816 = vmatpush.xpose.msra.mxu0 0.0
        %1817 = vmatpush.xpose.msra.mxu0 0.0
        %1818 = vmatpush.xpose.msra.mxu0 0.0
        %1819 = vmatpush.xpose.msra.mxu0 0.0
        %1820 = vmatpush.xpose.msra.mxu0 0.0
        %1821 = vmatpush.xpose.msra.mxu0 0.0
        %1822 = vmatpush.xpose.msra.mxu0 0.0
        %1823 = vmatpush.xpose.msra.mxu0 0.0
        %1824 = vmatpush.xpose.msra.mxu0 0.0
        %1825 = vmatpush.xpose.msra.mxu0 %v1637
        %1826 = vmatpush.xpose.msra.mxu0 %v1621
        %1827 = vmatpush.xpose.msra.mxu0 %v1605
        %1828 = vmatpush.xpose.msra.mxu0 %v1589
        %1829 = vmatmul.f32.gmra.mxu0 %v603
        %v1830 = vpop.f32.mrf.mxu0
        %v1831 = vadd.f32 0.0, %v1830
        %1832 = vmatmul.f32.gmra.mxu0 %v606
        %v1833 = vpop.f32.mrf.mxu0
        %v1834 = vadd.f32 0.0, %v1833
        %1835 = vmatmul.f32.gmra.mxu0 %v609
        %v1836 = vpop.f32.mrf.mxu0
        %v1837 = vadd.f32 0.0, %v1836
        %1838 = vmatmul.f32.gmra.mxu0 %v612
        %v1839 = vpop.f32.mrf.mxu0
        %v1840 = vadd.f32 0.0, %v1839
        %1841 = vdwg.mxu0
        %1842 = vmatpush.xpose.msra.mxu0 0.0
        %1843 = vmatpush.xpose.msra.mxu0 0.0
        %1844 = vmatpush.xpose.msra.mxu0 0.0
        %1845 = vmatpush.xpose.msra.mxu0 0.0
        %1846 = vmatpush.xpose.msra.mxu0 0.0
        %1847 = vmatpush.xpose.msra.mxu0 0.0
        %1848 = vmatpush.xpose.msra.mxu0 0.0
        %1849 = vmatpush.xpose.msra.mxu0 0.0
        %1850 = vmatpush.xpose.msra.mxu0 0.0
        %1851 = vmatpush.xpose.msra.mxu0 0.0
        %1852 = vmatpush.xpose.msra.mxu0 0.0
        %1853 = vmatpush.xpose.msra.mxu0 0.0
        %1854 = vmatpush.xpose.msra.mxu0 %v1638
        %1855 = vmatpush.xpose.msra.mxu0 %v1622
        %1856 = vmatpush.xpose.msra.mxu0 %v1606
        %1857 = vmatpush.xpose.msra.mxu0 %v1590
        %1858 = vmatmul.f32.gmra.mxu0 %v764
        %v1859 = vpop.f32.mrf.mxu0
        %v1860 = vadd.f32 %v1831, %v1859
        %1861 = vmatmul.f32.gmra.mxu0 %v767
        %v1862 = vpop.f32.mrf.mxu0
        %v1863 = vadd.f32 %v1834, %v1862
        %1864 = vmatmul.f32.gmra.mxu0 %v770
        %v1865 = vpop.f32.mrf.mxu0
        %v1866 = vadd.f32 %v1837, %v1865
        %1867 = vmatmul.f32.gmra.mxu0 %v773
        %v1868 = vpop.f32.mrf.mxu0
        %v1869 = vadd.f32 %v1840, %v1868
        %1870 = vdwg.mxu0
        %vm1871 = vcmask 261120
        %v1873 = vsel %vm1871, %v1686, 0
        %v1876 = vsel %vm1871, %v1689, 0
        %v1879 = vsel %vm1871, %v1692, 0
        %v1882 = vsel %vm1871, %v1695, 0
        %1884 = vmatpush.msra.mxu0 0.0
        %1885 = vmatpush.msra.mxu0 0.0
        %1886 = vmatpush.msra.mxu0 0.0
        %1887 = vmatpush.msra.mxu0 0.0
        %1888 = vmatpush.msra.mxu0 0.0
        %1889 = vmatpush.msra.mxu0 0.0
        %1890 = vmatpush.msra.mxu0 0.0
        %1891 = vmatpush.msra.mxu0 0.0
        %1892 = vmatpush.msra.mxu0 0.0
        %1893 = vmatpush.msra.mxu0 0.0
        %1894 = vmatpush.msra.mxu0 0.0
        %1895 = vmatpush.msra.mxu0 0.0
        %1896 = vmatpush.msra.mxu0 %v1165
        %1897 = vmatpush.msra.mxu0 %v1163
        %1898 = vmatpush.msra.mxu0 %v1161
        %1899 = vmatpush.msra.mxu0 %v1159
        %1900 = vmatmul.f32.gmra.mxu0 %v1873
        %v1901 = vpop.f32.mrf.mxu0
        %v1902 = vadd.f32 0.0, %v1901
        %1903 = vmatmul.f32.gmra.mxu0 %v1876
        %v1904 = vpop.f32.mrf.mxu0
        %v1905 = vadd.f32 0.0, %v1904
        %1906 = vmatmul.f32.gmra.mxu0 %v1879
        %v1907 = vpop.f32.mrf.mxu0
        %v1908 = vadd.f32 0.0, %v1907
        %1909 = vmatmul.f32.gmra.mxu0 %v1882
        %v1910 = vpop.f32.mrf.mxu0
        %v1911 = vadd.f32 0.0, %v1910
        %1912 = vdwg.mxu0
        %1913 = vmatpush.msra.mxu0 0.0
        %1914 = vmatpush.msra.mxu0 0.0
        %1915 = vmatpush.msra.mxu0 0.0
        %1916 = vmatpush.msra.mxu0 0.0
        %1917 = vmatpush.msra.mxu0 0.0
        %1918 = vmatpush.msra.mxu0 0.0
        %1919 = vmatpush.msra.mxu0 0.0
        %1920 = vmatpush.msra.mxu0 0.0
        %1921 = vmatpush.msra.mxu0 0.0
        %1922 = vmatpush.msra.mxu0 0.0
        %1923 = vmatpush.msra.mxu0 0.0
        %1924 = vmatpush.msra.mxu0 0.0
        %1925 = vmatpush.msra.mxu0 %v1166
        %1926 = vmatpush.msra.mxu0 %v1164
        %1927 = vmatpush.msra.mxu0 %v1162
        %1928 = vmatpush.msra.mxu0 %v1160
        %1929 = vmatmul.f32.gmra.mxu0 %v1873
        %v1930 = vpop.f32.mrf.mxu0
        %v1931 = vadd.f32 0.0, %v1930
        %1932 = vmatmul.f32.gmra.mxu0 %v1876
        %v1933 = vpop.f32.mrf.mxu0
        %v1934 = vadd.f32 0.0, %v1933
        %1935 = vmatmul.f32.gmra.mxu0 %v1879
        %v1936 = vpop.f32.mrf.mxu0
        %v1937 = vadd.f32 0.0, %v1936
        %1938 = vmatmul.f32.gmra.mxu0 %v1882
        %v1939 = vpop.f32.mrf.mxu0
        %v1940 = vadd.f32 0.0, %v1939
        %1941 = vdwg.mxu0
        %v1943 = vsel %vm1871, %v1744, 0
        %v1946 = vsel %vm1871, %v1747, 0
        %v1949 = vsel %vm1871, %v1750, 0
        %v1952 = vsel %vm1871, %v1753, 0
        %1954 = vmatpush.msra.mxu0 0.0
        %1955 = vmatpush.msra.mxu0 0.0
        %1956 = vmatpush.msra.mxu0 0.0
        %1957 = vmatpush.msra.mxu0 0.0
        %1958 = vmatpush.msra.mxu0 0.0
        %1959 = vmatpush.msra.mxu0 0.0
        %1960 = vmatpush.msra.mxu0 0.0
        %1961 = vmatpush.msra.mxu0 0.0
        %1962 = vmatpush.msra.mxu0 0.0
        %1963 = vmatpush.msra.mxu0 0.0
        %1964 = vmatpush.msra.mxu0 0.0
        %1965 = vmatpush.msra.mxu0 0.0
        %1966 = vmatpush.msra.mxu0 %v1173
        %1967 = vmatpush.msra.mxu0 %v1171
        %1968 = vmatpush.msra.mxu0 %v1169
        %1969 = vmatpush.msra.mxu0 %v1167
        %1970 = vmatmul.f32.gmra.mxu0 %v1943
        %v1971 = vpop.f32.mrf.mxu0
        %v1972 = vadd.f32 0.0, %v1971
        %1973 = vmatmul.f32.gmra.mxu0 %v1946
        %v1974 = vpop.f32.mrf.mxu0
        %v1975 = vadd.f32 0.0, %v1974
        %1976 = vmatmul.f32.gmra.mxu0 %v1949
        %v1977 = vpop.f32.mrf.mxu0
        %v1978 = vadd.f32 0.0, %v1977
        %1979 = vmatmul.f32.gmra.mxu0 %v1952
        %v1980 = vpop.f32.mrf.mxu0
        %v1981 = vadd.f32 0.0, %v1980
        %1982 = vdwg.mxu0
        %1983 = vmatpush.msra.mxu0 0.0
        %1984 = vmatpush.msra.mxu0 0.0
        %1985 = vmatpush.msra.mxu0 0.0
        %1986 = vmatpush.msra.mxu0 0.0
        %1987 = vmatpush.msra.mxu0 0.0
        %1988 = vmatpush.msra.mxu0 0.0
        %1989 = vmatpush.msra.mxu0 0.0
        %1990 = vmatpush.msra.mxu0 0.0
        %1991 = vmatpush.msra.mxu0 0.0
        %1992 = vmatpush.msra.mxu0 0.0
        %1993 = vmatpush.msra.mxu0 0.0
        %1994 = vmatpush.msra.mxu0 0.0
        %1995 = vmatpush.msra.mxu0 %v1174
        %1996 = vmatpush.msra.mxu0 %v1172
        %1997 = vmatpush.msra.mxu0 %v1170
        %1998 = vmatpush.msra.mxu0 %v1168
        %1999 = vmatmul.f32.gmra.mxu0 %v1943
        %v2000 = vpop.f32.mrf.mxu0
        %v2001 = vadd.f32 0.0, %v2000
        %2002 = vmatmul.f32.gmra.mxu0 %v1946
        %v2003 = vpop.f32.mrf.mxu0
        %v2004 = vadd.f32 0.0, %v2003
        %2005 = vmatmul.f32.gmra.mxu0 %v1949
        %v2006 = vpop.f32.mrf.mxu0
        %v2007 = vadd.f32 0.0, %v2006
        %2008 = vmatmul.f32.gmra.mxu0 %v1952
        %v2009 = vpop.f32.mrf.mxu0
        %v2010 = vadd.f32 0.0, %v2009
        %2011 = vdwg.mxu0
        %v2013 = vsel %vm1871, %v1802, 0
        %v2016 = vsel %vm1871, %v1805, 0
        %v2019 = vsel %vm1871, %v1808, 0
        %v2022 = vsel %vm1871, %v1811, 0
        %2024 = vmatpush.msra.mxu0 0.0
        %2025 = vmatpush.msra.mxu0 0.0
        %2026 = vmatpush.msra.mxu0 0.0
        %2027 = vmatpush.msra.mxu0 0.0
        %2028 = vmatpush.msra.mxu0 0.0
        %2029 = vmatpush.msra.mxu0 0.0
        %2030 = vmatpush.msra.mxu0 0.0
        %2031 = vmatpush.msra.mxu0 0.0
        %2032 = vmatpush.msra.mxu0 0.0
        %2033 = vmatpush.msra.mxu0 0.0
        %2034 = vmatpush.msra.mxu0 0.0
        %2035 = vmatpush.msra.mxu0 0.0
        %2036 = vmatpush.msra.mxu0 %v1181
        %2037 = vmatpush.msra.mxu0 %v1179
        %2038 = vmatpush.msra.mxu0 %v1177
        %2039 = vmatpush.msra.mxu0 %v1175
        %2040 = vmatmul.f32.gmra.mxu0 %v2013
        %v2041 = vpop.f32.mrf.mxu0
        %v2042 = vadd.f32 0.0, %v2041
        %2043 = vmatmul.f32.gmra.mxu0 %v2016
        %v2044 = vpop.f32.mrf.mxu0
        %v2045 = vadd.f32 0.0, %v2044
        %2046 = vmatmul.f32.gmra.mxu0 %v2019
        %v2047 = vpop.f32.mrf.mxu0
        %v2048 = vadd.f32 0.0, %v2047
        %2049 = vmatmul.f32.gmra.mxu0 %v2022
        %v2050 = vpop.f32.mrf.mxu0
        %v2051 = vadd.f32 0.0, %v2050
        %2052 = vdwg.mxu0
        %2053 = vmatpush.msra.mxu0 0.0
        %2054 = vmatpush.msra.mxu0 0.0
        %2055 = vmatpush.msra.mxu0 0.0
        %2056 = vmatpush.msra.mxu0 0.0
        %2057 = vmatpush.msra.mxu0 0.0
        %2058 = vmatpush.msra.mxu0 0.0
        %2059 = vmatpush.msra.mxu0 0.0
        %2060 = vmatpush.msra.mxu0 0.0
        %2061 = vmatpush.msra.mxu0 0.0
        %2062 = vmatpush.msra.mxu0 0.0
        %2063 = vmatpush.msra.mxu0 0.0
        %2064 = vmatpush.msra.mxu0 0.0
        %2065 = vmatpush.msra.mxu0 %v1182
        %2066 = vmatpush.msra.mxu0 %v1180
        %2067 = vmatpush.msra.mxu0 %v1178
        %2068 = vmatpush.msra.mxu0 %v1176
        %2069 = vmatmul.f32.gmra.mxu0 %v2013
        %v2070 = vpop.f32.mrf.mxu0
        %v2071 = vadd.f32 0.0, %v2070
        %2072 = vmatmul.f32.gmra.mxu0 %v2016
        %v2073 = vpop.f32.mrf.mxu0
        %v2074 = vadd.f32 0.0, %v2073
        %2075 = vmatmul.f32.gmra.mxu0 %v2019
        %v2076 = vpop.f32.mrf.mxu0
        %v2077 = vadd.f32 0.0, %v2076
        %2078 = vmatmul.f32.gmra.mxu0 %v2022
        %v2079 = vpop.f32.mrf.mxu0
        %v2080 = vadd.f32 0.0, %v2079
        %2081 = vdwg.mxu0
        %v2083 = vsel %vm1871, %v1860, 0
        %v2086 = vsel %vm1871, %v1863, 0
        %v2089 = vsel %vm1871, %v1866, 0
        %v2092 = vsel %vm1871, %v1869, 0
        %2094 = vmatpush.msra.mxu0 0.0
        %2095 = vmatpush.msra.mxu0 0.0
        %2096 = vmatpush.msra.mxu0 0.0
        %2097 = vmatpush.msra.mxu0 0.0
        %2098 = vmatpush.msra.mxu0 0.0
        %2099 = vmatpush.msra.mxu0 0.0
        %2100 = vmatpush.msra.mxu0 0.0
        %2101 = vmatpush.msra.mxu0 0.0
        %2102 = vmatpush.msra.mxu0 0.0
        %2103 = vmatpush.msra.mxu0 0.0
        %2104 = vmatpush.msra.mxu0 0.0
        %2105 = vmatpush.msra.mxu0 0.0
        %2106 = vmatpush.msra.mxu0 %v1189
        %2107 = vmatpush.msra.mxu0 %v1187
        %2108 = vmatpush.msra.mxu0 %v1185
        %2109 = vmatpush.msra.mxu0 %v1183
        %2110 = vmatmul.f32.gmra.mxu0 %v2083
        %v2111 = vpop.f32.mrf.mxu0
        %v2112 = vadd.f32 0.0, %v2111
        %2113 = vmatmul.f32.gmra.mxu0 %v2086
        %v2114 = vpop.f32.mrf.mxu0
        %v2115 = vadd.f32 0.0, %v2114
        %2116 = vmatmul.f32.gmra.mxu0 %v2089
        %v2117 = vpop.f32.mrf.mxu0
        %v2118 = vadd.f32 0.0, %v2117
        %2119 = vmatmul.f32.gmra.mxu0 %v2092
        %v2120 = vpop.f32.mrf.mxu0
        %v2121 = vadd.f32 0.0, %v2120
        %2122 = vdwg.mxu0
        %2123 = vmatpush.msra.mxu0 0.0
        %2124 = vmatpush.msra.mxu0 0.0
        %2125 = vmatpush.msra.mxu0 0.0
        %2126 = vmatpush.msra.mxu0 0.0
        %2127 = vmatpush.msra.mxu0 0.0
        %2128 = vmatpush.msra.mxu0 0.0
        %2129 = vmatpush.msra.mxu0 0.0
        %2130 = vmatpush.msra.mxu0 0.0
        %2131 = vmatpush.msra.mxu0 0.0
        %2132 = vmatpush.msra.mxu0 0.0
        %2133 = vmatpush.msra.mxu0 0.0
        %2134 = vmatpush.msra.mxu0 0.0
        %2135 = vmatpush.msra.mxu0 %v1190
        %2136 = vmatpush.msra.mxu0 %v1188
        %2137 = vmatpush.msra.mxu0 %v1186
        %2138 = vmatpush.msra.mxu0 %v1184
        %2139 = vmatmul.f32.gmra.mxu0 %v2083
        %v2140 = vpop.f32.mrf.mxu0
        %v2141 = vadd.f32 0.0, %v2140
        %2142 = vmatmul.f32.gmra.mxu0 %v2086
        %v2143 = vpop.f32.mrf.mxu0
        %v2144 = vadd.f32 0.0, %v2143
        %2145 = vmatmul.f32.gmra.mxu0 %v2089
        %v2146 = vpop.f32.mrf.mxu0
        %v2147 = vadd.f32 0.0, %v2146
        %2148 = vmatmul.f32.gmra.mxu0 %v2092
        %v2149 = vpop.f32.mrf.mxu0
        %v2150 = vadd.f32 0.0, %v2149
        %2151 = vdwg.mxu0
        %v2152 = vld [vmem:[%s2] sm:$0xf]
        %v2153 = vld [vmem:[%s3] sm:$0xf]
        %2155 = vset.pattern.permute.xlu0 0
        %2156 = vperm.xlu0 %2155, %v2153
        %v2157 = vpop.permute.xlu0 %2156
        %2159 = vmatpush.msra.mxu0 %v2121
        %2160 = vmatpush.msra.mxu0 %v2118
        %2161 = vmatpush.msra.mxu0 %v2115
        %2162 = vmatpush.msra.mxu0 %v2112
        %2163 = vmatpush.msra.mxu0 %v2051
        %2164 = vmatpush.msra.mxu0 %v2048
        %2165 = vmatpush.msra.mxu0 %v2045
        %2166 = vmatpush.msra.mxu0 %v2042
        %2167 = vmatpush.msra.mxu0 %v1981
        %2168 = vmatpush.msra.mxu0 %v1978
        %2169 = vmatpush.msra.mxu0 %v1975
        %2170 = vmatpush.msra.mxu0 %v1972
        %2171 = vmatpush.msra.mxu0 %v1911
        %2172 = vmatpush.msra.mxu0 %v1908
        %2173 = vmatpush.msra.mxu0 %v1905
        %2174 = vmatpush.msra.mxu0 %v1902
        %2175 = vmatmul.f32.gmra.mxu0 %v2152
        %v2176 = vpop.f32.mrf.mxu0
        %v2177 = vadd.f32 %v2157, %v2176
        %2178 = vdwg.mxu0
        %2179 = vmatpush.msra.mxu0 %v2150
        %2180 = vmatpush.msra.mxu0 %v2147
        %2181 = vmatpush.msra.mxu0 %v2144
        %2182 = vmatpush.msra.mxu0 %v2141
        %2183 = vmatpush.msra.mxu0 %v2080
        %2184 = vmatpush.msra.mxu0 %v2077
        %2185 = vmatpush.msra.mxu0 %v2074
        %2186 = vmatpush.msra.mxu0 %v2071
        %2187 = vmatpush.msra.mxu0 %v2010
        %2188 = vmatpush.msra.mxu0 %v2007
        %2189 = vmatpush.msra.mxu0 %v2004
        %2190 = vmatpush.msra.mxu0 %v2001
        %2191 = vmatpush.msra.mxu0 %v1940
        %2192 = vmatpush.msra.mxu0 %v1937
        %2193 = vmatpush.msra.mxu0 %v1934
        %2194 = vmatpush.msra.mxu0 %v1931
        %2195 = vmatmul.f32.gmra.mxu0 %v2152
        %v2196 = vpop.f32.mrf.mxu0
        %v2197 = vadd.f32 %v2157, %v2196
        %2198 = vdwg.mxu0
        %v2199 = vsel %vm448, %v2177, 0.0
        %v2200 = vsel %vm448, %v2197, 0.0
        %v2201 = vadd.f32 %v2199, %v2200
        %2202 = vadd.xlane.f32.xlu0 %v2201
        %v2203 = vpop.xlane.xlu0 %2202
        %v2204 = vrot.slane %v2203, 4
        %v2205 = vadd.f32 %v2203, %v2204
        %v2206 = vrot.slane %v2205, 2
        %v2207 = vadd.f32 %v2205, %v2206
        %v2208 = vrot.slane %v2207, 1
        %v2209 = vadd.f32 %v2207, %v2208
        %s2210 = vtos %v2209
        %s2211 = smul.f32 %s2210, 0.0009765625
        %v2212 = vmul.f32 %v2177, %v2177
        %v2213 = vmul.f32 %v2197, %v2197
        %v2214 = vsel %vm448, %v2212, 0.0
        %v2215 = vsel %vm448, %v2213, 0.0
        %v2216 = vadd.f32 %v2214, %v2215
        %2217 = vadd.xlane.f32.xlu0 %v2216
        %v2218 = vpop.xlane.xlu0 %2217
        %v2219 = vrot.slane %v2218, 4
        %v2220 = vadd.f32 %v2218, %v2219
        %v2221 = vrot.slane %v2220, 2
        %v2222 = vadd.f32 %v2220, %v2221
        %v2223 = vrot.slane %v2222, 1
        %v2224 = vadd.f32 %v2222, %v2223
        %s2225 = vtos %v2224
        %s2226 = smul.f32 %s2225, 0.0009765625
        %s2227 = smul.f32 %s2211, %s2211
        %s2228 = ssub.f32 %s2226, %s2227
        %v2229 = vstv %s2211
        %v2230 = vsub.f32 %v2177, %v2229
        %v2231 = vsub.f32 %v2197, %v2229
        %s2232 = sadd.f32 %s2228, 1e-05
        %v2233 = vstv %s2232
        %v2234 = vrsqrt.pop %v2233
        %v2235 = vmul.f32 %v2234, %v2233
        %v2236 = vmul.f32 %v2235, %v2234
        %v2237 = vmul.f32 0.5, %v2236
        %v2238 = vsub.f32 1.5, %v2237
        %v2239 = vmul.f32 %v2234, %v2238
        %vm2240 = vweird.f32 %v2233
        %vm2241 = vweird.f32 %v2234
        %vm2242 = vmor %vm2240, %vm2241
        %v2243 = vsel %vm2242, %v2234, %v2239
        %s2244 = vtos %v2243
        %v2245 = vstv %s2244
        %v2246 = vmul.f32 %v2230, %v2245
        %v2247 = vmul.f32 %v2231, %v2245
        %v2248 = vld [vmem:[%s4] sm:$0xf]
        %2250 = vset.pattern.permute.xlu0 0
        %2251 = vperm.xlu0 %2250, %v2248
        %v2252 = vpop.permute.xlu0 %2251
        %v2254 = vmul.f32 %v2246, %v2252
        %v2255 = vmul.f32 %v2247, %v2252
        %v2256 = vld [vmem:[%s5] sm:$0xf]
        %2258 = vset.pattern.permute.xlu0 0
        %2259 = vperm.xlu0 %2258, %v2256
        %v2260 = vpop.permute.xlu0 %2259
        %v2262 = vadd.f32 %v2254, %v2260
        %v2263 = vadd.f32 %v2255, %v2260
        %v2266 = vrot.slane %v2263, 4
        %v2267 = vsel %vm448, %v2262, %v2266
        %2269 = vst [vmem:[%s244] sm:$0xff] %v2267
        %s2270 = sand.u32 %s159, 1
        %s2271 = scalar_lea.sflag [#allocation3], %s2270
        %s2272 = sand.u32 %s159, 1
        %s2273 = smul.addr %s2272, 8
        %s2274 = scalar_lea.vmem [#allocation2], %s2273
        // Predicated region
        $region45: #{tpu_custom_call.1} parent=43 // pred_check
          %p2275 = pneg %p169
        $region46: #{tpu_custom_call.1} parent=43 // pred_check_branch
          %2277 = sbr.rel (%p2275) target = $region48
        $region47: #{tpu_custom_call.1} parent=43 // pred_region
          %2279 = vsyncadd %s2271, 0
          %s2280 = smul.addr %s20, 2
          %s2281 = smul.addr %s2280, 4
          %s2282 = scalar_lea.hbm %s6, %s2281
          %s2284 = sshll.u32 %s2274, 4
          %s2285 = int_to_ptr.vmem [resolvable:$true] %s2284
          %s2286 = sshll.u32 %s2282, 4
          %s2287 = int_to_ptr.hbm [resolvable:$true] %s2286
          %2289 = dma.vmem_to_hbm [thread:$0]  %s2285, 128, %s2287, %s2271
        $region48: #{tpu_custom_call.1} parent=43 // pred_fallthru
          _
      $region44: #{tpu_custom_call.1} parent=5 // pred_fallthru
        _
      %p2290 = scmp.le.s32.totalorder 2, %s15
      // Predicated region
      $region49: #{tpu_custom_call.1} parent=5 // pred_check
        %p2291 = pneg %p2290
      $region50: #{tpu_custom_call.1} parent=5 // pred_check_branch
        %2293 = sbr.rel (%p2291) target = $region52
      $region51: #{tpu_custom_call.1} parent=5 // pred_region
        %s2294 = ssub.s32 %s15, 2
        // Predicated region
        $region53: #{tpu_custom_call.1} parent=51 // pred_check
          %p2295 = pneg %p175
        $region54: #{tpu_custom_call.1} parent=51 // pred_check_branch
          %2297 = sbr.rel (%p2295) target = $region56
        $region55: #{tpu_custom_call.1} parent=51 // pred_region
          %s2298 = sand.u32 %s160, 1
          %s2299 = scalar_lea.sflag [#allocation3], %s2298
          %s2300 = sand.u32 %s160, 1
          %s2301 = smul.addr %s2300, 8
          %s2302 = scalar_lea.vmem [#allocation2], %s2301
          %2304 = dma.done %s2299, 128
        $region56: #{tpu_custom_call.1} parent=51 // pred_fallthru
          _
      $region52: #{tpu_custom_call.1} parent=5 // pred_fallthru
        _
    $region6: #{tpu_custom_call.1} parent=1 // loop_footer
      %s19 = sadd.s32 1, %s15
    $region7: #{tpu_custom_call.1} parent=1 // loop_footer_branch
      %14 = sbr.rel target = $region3
    $region8: #{tpu_custom_call.1} parent=1 // loop_exit
      _
    %2305 = vsyncpa [#allocation3], 1
    %s2306 = scalar_lea.sflag [#allocation3], 1
    %2307 = vsyncpa %s2306, 1

</llo_original>
